<compile_context>
chip_gen: v7x
topology: tpu7x:2x2x1
jax: 0.10.0
libtpu: 0.0.40
codegen_flags: <defaults>
</compile_context>

<pallas_src>
import functools
import jax
import jax.numpy as jnp
from jax.experimental import pallas as pl
from jax.experimental.pallas import tpu as pltpu

E = 32           # embedding size
LANES = 128      # lane width for packed tensors

DISCRETE_COLS = ['pigfarm_dk', 'is_single', 'month']
PAST7_COLS = [f'abortion_rate_past_{d + 1}d' for d in range(7)]
DIFF1_COLS = [f'abortion_rate_diff_{d}d' for d in range(1, 7)]
DIFF2_COLS = [f'abortion_rate_diff2_{d}d' for d in range(1, 6)]
CONTINUOUS_COLS = ['intro_num'] + PAST7_COLS + DIFF1_COLS + DIFF2_COLS
ALL_COLS = DISCRETE_COLS + CONTINUOUS_COLS
FEATURE_INDICES = {c: 2 * i for i, c in enumerate(ALL_COLS)}
CLASS_NUM = {'pigfarm_dk': 10, 'is_single': 2, 'month': 12}

# Row offsets / sizes of each embedding table inside the block-diag [32,128]:
# pigfarm_dk rows 0..10 -> cols 0..31, is_single rows 11..13 -> cols 32..63,
# month rows 14..26 -> cols 64..95.
_EMB_ROW_OFF = (0, 11, 14)
_CLASS_MAX = (10, 2, 12)

# Packed-input lane layout inside the [B, 128] tensor:
#  0:3   discrete indices (float)     3:6   discrete masks
#  6:7   intro value                  7:8   intro mask
#  8:15  past-7d values               15:22 past-7d masks
#  22:28 diff1 values                 28:34 diff1 masks
#  34:39 diff2 values                 39:44 diff2 masks
#  44:128 zero padding

_MLP_DIMS = (E, 128, 64, 32, 8, 3)
# Effective contraction widths for each MLP layer (true K, clamped to >=32 so
# padded-zero lanes cost nothing and sub-32 slices are avoided).
_MLP_K = (32, 128, 64, 32, 32)


def _round_up(x, m):
    return ((x + m - 1) // m) * m


def _cdiv(a, b):
    return -(-a // b)


def _nfm_lstm_kernel(
    x_ref,        # [TB, 128]   packed inputs (batch-tiled)
    emb_ref,      # [32, 128]   block-diagonal embedding tables (f32)
    rows32_ref,   # [16, 32]    intro w/b, abort w/b/w2/wb/b2, bn g/b/mean/var
    rows128_ref,  # [8, 128]    d1_w@Wih, d1_b@Wih, lstm1 bias (i,f,o,g order)
    rows256_ref,  # [8, 256]    fused-layout d1/d2 x-proj rows + fused bias
    whh_f_ref,    # [64, 256]   fused block-diag W_hh (bf16)
    whh1_ref,     # [32, 128]   lstm1 W_hh, (i,f,o,g) order (bf16)
    mlp_w_ref,    # [5, 128, 128] zero-padded [in,out] weights (bf16)
    mlp_b_ref,    # [5, 128]    zero-padded biases (f32)
    out_ref,      # [TB, 128]   lane-dense output (logits in cols 0:3)
):
    f32 = jnp.float32
    bf16 = jnp.bfloat16
    TB = x_ref.shape[0]
    x = x_ref[...]

    # ---- unpack small 32-lane parameter rows ----
    intro_w = rows32_ref[0:1, :]
    intro_b = rows32_ref[1:2, :]
    abort_w = rows32_ref[2:3, :]
    abort_b = rows32_ref[3:4, :]
    abort_ww = rows32_ref[4:5, :]
    abort_wb = rows32_ref[5:6, :]
    abort_bb = rows32_ref[6:7, :]
    bn_g = rows32_ref[7:8, :]
    bn_b = rows32_ref[8:9, :]
    bn_m = rows32_ref[9:10, :]
    bn_v = rows32_ref[10:11, :]

    # ---- discrete embeddings: masked one-hot @ block-diagonal table ----
    lane = jax.lax.broadcasted_iota(jnp.int32, (TB, E), 1)
    oh = jnp.zeros((TB, E), f32)
    for k in range(3):
        raw = x[:, k:k + 1].astype(jnp.int32)           # truncate, like .long()
        valid = ((raw >= 0) & (raw <= _CLASS_MAX[k])).astype(f32)
        m = x[:, 3 + k:4 + k] * valid
        oh = oh + (lane == (raw + _EMB_ROW_OFF[k])).astype(f32) * m
    embs = jnp.dot(oh, emb_ref[...], preferred_element_type=f32)  # [TB,128]

    s = jnp.zeros((TB, E), f32)    # sum of feature embeddings
    sq = jnp.zeros((TB, E), f32)   # sum of squared feature embeddings
    for k in range(3):
        e = embs[:, k * E:(k + 1) * E]
        s = s + e
        sq = sq + e * e

    # ---- intro_num: Linear(1,E) then mask ----
    e = (x[:, 6:7] * intro_w + intro_b) * x[:, 7:8]
    s = s + e
    sq = sq + e * e

    # ---- past-7d abortion rates (shared Linear(1,E)) collapsed algebraically ----
    pv = x[:, 8:15]      # [TB,7]
    pm = x[:, 15:22]     # [TB,7]
    vm = pv * pm
    sum_vm = jnp.sum(vm, axis=-1, keepdims=True)            # Σ v m
    sum_m = jnp.sum(pm, axis=-1, keepdims=True)             # Σ m
    sum_vm2 = jnp.sum(vm * vm, axis=-1, keepdims=True)      # Σ v² m²
    sum_vmm = jnp.sum(vm * pm, axis=-1, keepdims=True)      # Σ v m²
    sum_m2 = jnp.sum(pm * pm, axis=-1, keepdims=True)       # Σ m²
    s = s + sum_vm * abort_w + sum_m * abort_b
    sq = sq + sum_vm2 * abort_ww + 2.0 * sum_vmm * abort_wb + sum_m2 * abort_bb

    # ---- fused LSTM recurrence over diff1 (6 steps) + diff2 (5 steps) ----
    # Fused lane layout (8E=256): i1 i2 | f1 f2 | o1 o2 | g1 g2 (each 32 lanes).
    d1_ww256 = rows256_ref[0:1, :]
    d1_wb256 = rows256_ref[1:2, :]
    d2_ww256 = rows256_ref[2:3, :]
    d2_wb256 = rows256_ref[3:4, :]
    bias_f = rows256_ref[4:5, :]

    d1v = x[:, 22:28]
    d1m = x[:, 28:34]
    d2v = x[:, 34:39]
    d2m = x[:, 39:44]

    # Hoisted input projections (off the serial recurrence chain):
    # x_t @ W_ih = m * (v * (w @ W_ih) + b @ W_ih), per LSTM, disjoint lanes.
    xprojs = []
    for t in range(5):
        p1 = d1m[:, t:t + 1] * (d1v[:, t:t + 1] * d1_ww256 + d1_wb256)
        p2 = d2m[:, t:t + 1] * (d2v[:, t:t + 1] * d2_ww256 + d2_wb256)
        xprojs.append(p1 + p2)                               # [TB,256]

    d1_ww128 = rows128_ref[0:1, :]
    d1_wb128 = rows128_ref[1:2, :]
    b1_128 = rows128_ref[2:3, :]
    xproj_last = d1m[:, 5:6] * (d1v[:, 5:6] * d1_ww128 + d1_wb128)  # [TB,128]

    whh_f = whh_f_ref[...]                                   # bf16 [64,256]
    h = jnp.zeros((TB, 2 * E), f32)                          # [h1 | h2]
    c = jnp.zeros((TB, 2 * E), f32)
    for t in range(5):
        gates = (xprojs[t]
                 + jnp.dot(h.astype(bf16), whh_f, preferred_element_type=f32)
                 + bias_f)                                   # [TB,256]
        sg = jax.nn.sigmoid(gates[:, :6 * E])                # i,f,o  [TB,192]
        gg = jnp.tanh(gates[:, 6 * E:8 * E])                 # g      [TB,64]
        i_g = sg[:, 0:2 * E]
        f_g = sg[:, 2 * E:4 * E]
        o_g = sg[:, 4 * E:6 * E]
        c = f_g * c + i_g * gg
        h = o_g * jnp.tanh(c)

    # Final step runs for LSTM1 only (diff1 has 6 timesteps, diff2 has 5).
    h1 = h[:, 0:E]
    c1 = c[:, 0:E]
    h2 = h[:, E:2 * E]
    gates1 = (xproj_last
              + jnp.dot(h1.astype(bf16), whh1_ref[...], preferred_element_type=f32)
              + b1_128)                                      # [TB,128]
    sg1 = jax.nn.sigmoid(gates1[:, :3 * E])
    gg1 = jnp.tanh(gates1[:, 3 * E:4 * E])
    i1 = sg1[:, 0:E]
    f1 = sg1[:, E:2 * E]
    o1 = sg1[:, 2 * E:3 * E]
    c1 = f1 * c1 + i1 * gg1
    h1 = o1 * jnp.tanh(c1)

    s = s + h1 + h2
    sq = sq + h1 * h1 + h2 * h2

    # ---- NFM feature interaction: 0.5 * ((Σe)^2 - Σe^2)  (f32) ----
    cross = 0.5 * (s * s - sq)

    # ---- BatchNorm1d (eval mode, running stats) ----
    eps = 1e-5
    a = (cross - bn_m) * jax.lax.rsqrt(bn_v + eps) * bn_g + bn_b   # [TB,32]

    # ---- MLP: 32 -> 128 -> 64 -> 32 -> 8 -> 3; true-K matmuls, bf16 weights ----
    for l in range(5):
        k = _MLP_K[l]
        w = mlp_w_ref[l, 0:k, :]                             # bf16 [k,128]
        a = jnp.dot(a.astype(bf16), w, preferred_element_type=f32) \
            + mlp_b_ref[l:l + 1, :]                          # [TB,128]
        if l < 4:
            a = jnp.maximum(a, 0.0)
            a = a[:, 0:_MLP_K[l + 1]]                        # drop padded lanes

    out_ref[...] = a.astype(out_ref.dtype)                   # lane-dense [TB,128]


def init_params(key, emb_size=E):
    keys = iter(jax.random.split(key, 64))
    p = {}

    def rnd(shape, scale=0.1):
        return (scale * jax.random.normal(next(keys), shape)).astype(jnp.float32)

    for feat in DISCRETE_COLS:
        p[f'emb_{feat}'] = rnd((CLASS_NUM[feat] + 1, emb_size))

    for name in ['intro', 'abort', 'diff1', 'diff2']:
        p[f'{name}_w'] = rnd((1, emb_size))
        p[f'{name}_b'] = rnd((1, emb_size))

    # LSTMs: PyTorch W_ih/W_hh are [4E,E]; stored transposed [E,4E];
    # combined bias b_ih + b_hh as [1,4E]; gate order (i, f, g, o).
    for name in ['lstm1', 'lstm2']:
        p[f'{name}_wih'] = rnd((emb_size, 4 * emb_size))
        p[f'{name}_whh'] = rnd((emb_size, 4 * emb_size))
        p[f'{name}_b'] = rnd((1, 4 * emb_size))

    p['bn_gamma'] = jnp.ones((1, emb_size), jnp.float32)
    p['bn_beta'] = jnp.zeros((1, emb_size), jnp.float32)
    p['bn_mean'] = jnp.zeros((1, emb_size), jnp.float32)
    p['bn_var'] = jnp.ones((1, emb_size), jnp.float32)

    dims = list(_MLP_DIMS)
    for i in range(5):
        p[f'mlp_w{i + 1}'] = rnd((dims[i], dims[i + 1]))
        p[f'mlp_b{i + 1}'] = rnd((1, dims[i + 1]))
    return p


def _pack_inputs(x, b_pad):
    """x: [B,44] interleaved (value,mask) -> packed [b_pad,128]."""
    B = x.shape[0]
    parts = [
        x[:, 0:6:2],      # disc values (3)
        x[:, 1:6:2],      # disc masks  (3)
        x[:, 6:7],        # intro value
        x[:, 7:8],        # intro mask
        x[:, 8:22:2],     # past7 values (7)
        x[:, 9:22:2],     # past7 masks  (7)
        x[:, 22:34:2],    # diff1 values (6)
        x[:, 23:34:2],    # diff1 masks  (6)
        x[:, 34:44:2],    # diff2 values (5)
        x[:, 35:44:2],    # diff2 masks  (5)
        jnp.zeros((B, LANES - 44), x.dtype),
    ]
    packed = jnp.concatenate(parts, axis=-1)
    if b_pad != B:
        packed = jnp.concatenate(
            [packed, jnp.zeros((b_pad - B, LANES), x.dtype)], axis=0)
    return packed.astype(jnp.float32)


def _reorder_ifog(w):
    """Reorder the last (4E) axis from PyTorch (i,f,g,o) to (i,f,o,g)."""
    return jnp.concatenate(
        [w[..., 0:E], w[..., E:2 * E], w[..., 3 * E:4 * E], w[..., 2 * E:3 * E]],
        axis=-1)


def _to_fused(r, which):
    """Scatter an (i,f,o,g)-ordered [..., 4E] row/matrix into the fused
    [..., 8E] layout (i1,i2,f1,f2,o1,o2,g1,g2); `which` selects LSTM 0/1."""
    out = jnp.zeros(r.shape[:-1] + (8 * E,), r.dtype)
    for blk in range(4):
        lo = blk * 2 * E + which * E
        out = out.at[..., lo:lo + E].set(r[..., blk * E:(blk + 1) * E])
    return out


def _pack_params(params):
    f32 = jnp.float32
    bf16 = jnp.bfloat16

    # -- block-diagonal embedding table [32,128] --
    emb = jnp.zeros((E, LANES), f32)
    emb = emb.at[0:11, 0:32].set(params['emb_pigfarm_dk'])
    emb = emb.at[11:14, 32:64].set(params['emb_is_single'])
    emb = emb.at[14:27, 64:96].set(params['emb_month'])

    # -- 32-lane rows: Linear(1,E) params, precomputed abort products, BN --
    aw, ab = params['abort_w'], params['abort_b']
    rows32 = jnp.zeros((16, E), f32)
    rows32 = rows32.at[0:11].set(jnp.concatenate([
        params['intro_w'], params['intro_b'],
        aw, ab, aw * aw, aw * ab, ab * ab,
        params['bn_gamma'], params['bn_beta'],
        params['bn_mean'], params['bn_var']], axis=0))

    # -- LSTM weights, gate order (i,f,o,g) --
    wih1 = _reorder_ifog(params['lstm1_wih'])    # [32,128]
    whh1 = _reorder_ifog(params['lstm1_whh'])
    b1 = _reorder_ifog(params['lstm1_b'])        # [1,128]
    wih2 = _reorder_ifog(params['lstm2_wih'])
    whh2 = _reorder_ifog(params['lstm2_whh'])
    b2 = _reorder_ifog(params['lstm2_b'])

    # Precomputed data-independent products (no in-kernel M=1 matmuls).
    d1_ww = jnp.dot(params['diff1_w'], wih1)
    d1_wb = jnp.dot(params['diff1_b'], wih1)
    d2_ww = jnp.dot(params['diff2_w'], wih2)
    d2_wb = jnp.dot(params['diff2_b'], wih2)

    rows128 = jnp.zeros((8, LANES), f32)
    rows128 = rows128.at[0:3].set(jnp.concatenate([d1_ww, d1_wb, b1], axis=0))

    rows256 = jnp.zeros((8, 2 * LANES), f32)
    rows256 = rows256.at[0:5].set(jnp.concatenate([
        _to_fused(d1_ww, 0), _to_fused(d1_wb, 0),
        _to_fused(d2_ww, 1), _to_fused(d2_wb, 1),
        _to_fused(b1, 0) + _to_fused(b2, 1)], axis=0))

    whh_fused = jnp.concatenate(
        [_to_fused(whh1, 0), _to_fused(whh2, 1)], axis=0).astype(bf16)  # [64,256]
    whh1_bf = whh1.astype(bf16)                                         # [32,128]

    dims = list(_MLP_DIMS)
    mlp_w = jnp.zeros((5, LANES, LANES), f32)
    mlp_b = jnp.zeros((5, LANES), f32)
    for l in range(5):
        mlp_w = mlp_w.at[l, :dims[l], :dims[l + 1]].set(params[f'mlp_w{l + 1}'])
        mlp_b = mlp_b.at[l, :dims[l + 1]].set(params[f'mlp_b{l + 1}'][0])
    mlp_w = mlp_w.astype(bf16)

    return emb, rows32, rows128, rows256, whh_fused, whh1_bf, mlp_w, mlp_b


def _choose_tiling(B, block_b):
    """Pick (TB, B_pad): TB multiple of 8, <= block_b; grid even when possible
    so v7x's two TensorCores get balanced work."""
    B8 = _round_up(max(B, 1), 8)
    if B8 <= 8:
        return B8, B8                      # grid = 1 (can't split 8 rows)
    n_blocks = 2 * max(1, _cdiv(B8, 2 * block_b))
    TB = _round_up(_cdiv(B8, n_blocks), 8)
    return TB, n_blocks * TB


@functools.partial(jax.jit, static_argnames=('block_b',))
def nfm_lstm_forward(x, params, block_b=512):
    """x: [B, 44] float32 (value, mask interleaved) -> [B, 3] float32."""
    B = x.shape[0]
    TB, B_pad = _choose_tiling(B, block_b)

    packed = _pack_inputs(x, B_pad)
    emb, rows32, rows128, rows256, whh_f, whh1, mlp_w, mlp_b = _pack_params(params)

    grid = (B_pad // TB,)
    batch_spec = pl.BlockSpec((TB, LANES), lambda i: (i, 0))

    out = pl.pallas_call(
        _nfm_lstm_kernel,
        out_shape=jax.ShapeDtypeStruct((B_pad, LANES), jnp.float32),
        grid=grid,
        in_specs=[
            batch_spec,                                              # packed inputs
            pl.BlockSpec((E, LANES), lambda i: (0, 0)),              # emb table
            pl.BlockSpec((16, E), lambda i: (0, 0)),                 # rows32
            pl.BlockSpec((8, LANES), lambda i: (0, 0)),              # rows128
            pl.BlockSpec((8, 2 * LANES), lambda i: (0, 0)),          # rows256
            pl.BlockSpec((2 * E, 2 * LANES), lambda i: (0, 0)),      # fused W_hh
            pl.BlockSpec((E, LANES), lambda i: (0, 0)),              # lstm1 W_hh
            pl.BlockSpec((5, LANES, LANES), lambda i: (0, 0, 0)),    # mlp weights
            pl.BlockSpec((5, LANES), lambda i: (0, 0)),              # mlp biases
        ],
        out_specs=batch_spec,
        compiler_params=pltpu.CompilerParams(
            dimension_semantics=("parallel",),
            vmem_limit_bytes=32 << 20),
    )(packed, emb, rows32, rows128, rows256, whh_f, whh1, mlp_w, mlp_b)

    return out[:B, :3]


if __name__ == "__main__":
    key = jax.random.PRNGKey(0)
    k_param, k_disc, k_mask, k_cont = jax.random.split(key, 4)

    params = init_params(k_param)

    B = 8
    n_feat = len(ALL_COLS)          # 22 features -> 44 columns
    x = jnp.zeros((B, 2 * n_feat), jnp.float32)

    # discrete value columns: valid integer indices
    dk = jax.random.split(k_disc, len(DISCRETE_COLS))
    for i, feat in enumerate(DISCRETE_COLS):
        idx = FEATURE_INDICES[feat]
        vals = jax.random.randint(dk[i], (B,), 0, CLASS_NUM[feat] + 1).astype(jnp.float32)
        x = x.at[:, idx].set(vals)

    # continuous value columns: random normals
    cont_idx = jnp.array([FEATURE_INDICES[f] for f in CONTINUOUS_COLS])
    cont_vals = jax.random.normal(k_cont, (B, len(CONTINUOUS_COLS))).astype(jnp.float32)
    x = x.at[:, cont_idx].set(cont_vals)

    # all mask columns: random {0,1}
    mask_idx = jnp.array([FEATURE_INDICES[f] + 1 for f in ALL_COLS])
    masks = jax.random.bernoulli(k_mask, 0.8, (B, n_feat)).astype(jnp.float32)
    x = x.at[:, mask_idx].set(masks)

    out = nfm_lstm_forward(x, params)
    out = jax.block_until_ready(out)
    assert out.shape == (B, 3) and out.dtype == jnp.float32
    assert bool(jnp.all(jnp.isfinite(out)))
    print("KERNEL_OK")
</pallas_src>

<mosaic_0001>
module attributes {stable_mosaic.version = 11 : i64} {
  func.func @_nfm_lstm_kernel(%arg0: i32, %arg1: memref<8x128xf32, #tpu.memory_space<vmem>>, %arg2: memref<32x128xf32, #tpu.memory_space<vmem>>, %arg3: memref<16x32xf32, #tpu.memory_space<vmem>>, %arg4: memref<8x128xf32, #tpu.memory_space<vmem>>, %arg5: memref<8x256xf32, #tpu.memory_space<vmem>>, %arg6: memref<64x256xbf16, #tpu.memory_space<vmem>>, %arg7: memref<32x128xbf16, #tpu.memory_space<vmem>>, %arg8: memref<5x128x128xbf16, #tpu.memory_space<vmem>>, %arg9: memref<5x128xf32, #tpu.memory_space<vmem>>, %arg10: memref<8x128xf32, #tpu.memory_space<vmem>>) attributes {dimension_semantics = [#tpu.dimension_semantics<parallel>], iteration_bounds = array<i64: 1>, scalar_prefetch = 0 : i64, scratch_operands = 0 : i64, tpu.core_type = #tpu.core_type<tc>, window_params = [{transform_indices = @transform_0, window_bounds = array<i64: 8, 128>}, {pipeline_mode = #tpu.pipeline_mode<synchronous>, transform_indices = @transform_1, window_bounds = array<i64: 32, 128>}, {pipeline_mode = #tpu.pipeline_mode<synchronous>, transform_indices = @transform_2, window_bounds = array<i64: 16, 32>}, {pipeline_mode = #tpu.pipeline_mode<synchronous>, transform_indices = @transform_3, window_bounds = array<i64: 8, 128>}, {pipeline_mode = #tpu.pipeline_mode<synchronous>, transform_indices = @transform_4, window_bounds = array<i64: 8, 256>}, {pipeline_mode = #tpu.pipeline_mode<synchronous>, transform_indices = @transform_5, window_bounds = array<i64: 64, 256>}, {pipeline_mode = #tpu.pipeline_mode<synchronous>, transform_indices = @transform_6, window_bounds = array<i64: 32, 128>}, {pipeline_mode = #tpu.pipeline_mode<synchronous>, transform_indices = @transform_7, window_bounds = array<i64: 5, 128, 128>}, {pipeline_mode = #tpu.pipeline_mode<synchronous>, transform_indices = @transform_8, window_bounds = array<i64: 5, 128>}, {transform_indices = @transform_9, window_bounds = array<i64: 8, 128>}]} {
    %c0 = arith.constant 0 : index
    %c0_0 = arith.constant 0 : index
    %0 = vector.load %arg1[%c0, %c0_0] : memref<8x128xf32, #tpu.memory_space<vmem>>, vector<8x128xf32>
    %c0_1 = arith.constant 0 : index
    %c0_2 = arith.constant 0 : index
    %1 = vector.load %arg3[%c0_1, %c0_2] : memref<16x32xf32, #tpu.memory_space<vmem>>, vector<1x32xf32>
    %c1 = arith.constant 1 : index
    %c0_3 = arith.constant 0 : index
    %2 = vector.load %arg3[%c1, %c0_3] : memref<16x32xf32, #tpu.memory_space<vmem>>, vector<1x32xf32>
    %c2 = arith.constant 2 : index
    %c0_4 = arith.constant 0 : index
    %3 = vector.load %arg3[%c2, %c0_4] : memref<16x32xf32, #tpu.memory_space<vmem>>, vector<1x32xf32>
    %c3 = arith.constant 3 : index
    %c0_5 = arith.constant 0 : index
    %4 = vector.load %arg3[%c3, %c0_5] : memref<16x32xf32, #tpu.memory_space<vmem>>, vector<1x32xf32>
    %c4 = arith.constant 4 : index
    %c0_6 = arith.constant 0 : index
    %5 = vector.load %arg3[%c4, %c0_6] : memref<16x32xf32, #tpu.memory_space<vmem>>, vector<1x32xf32>
    %c5 = arith.constant 5 : index
    %c0_7 = arith.constant 0 : index
    %6 = vector.load %arg3[%c5, %c0_7] : memref<16x32xf32, #tpu.memory_space<vmem>>, vector<1x32xf32>
    %c6 = arith.constant 6 : index
    %c0_8 = arith.constant 0 : index
    %7 = vector.load %arg3[%c6, %c0_8] : memref<16x32xf32, #tpu.memory_space<vmem>>, vector<1x32xf32>
    %c7 = arith.constant 7 : index
    %c0_9 = arith.constant 0 : index
    %8 = vector.load %arg3[%c7, %c0_9] : memref<16x32xf32, #tpu.memory_space<vmem>>, vector<1x32xf32>
    %c8 = arith.constant 8 : index
    %c0_10 = arith.constant 0 : index
    %9 = vector.load %arg3[%c8, %c0_10] : memref<16x32xf32, #tpu.memory_space<vmem>>, vector<1x32xf32>
    %c9 = arith.constant 9 : index
    %c0_11 = arith.constant 0 : index
    %10 = vector.load %arg3[%c9, %c0_11] : memref<16x32xf32, #tpu.memory_space<vmem>>, vector<1x32xf32>
    %c10 = arith.constant 10 : index
    %c0_12 = arith.constant 0 : index
    %11 = vector.load %arg3[%c10, %c0_12] : memref<16x32xf32, #tpu.memory_space<vmem>>, vector<1x32xf32>
    %12 = tpu.iota {dimensions = array<i32: 1>} : vector<8x32xi32>
    %cst = arith.constant 0.000000e+00 : f32
    %13 = vector.broadcast %cst : f32 to vector<8x32xf32>
    %14 = vector.extract_strided_slice %0 {offsets = [0, 0], sizes = [8, 1], strides = [1, 1]} : vector<8x128xf32> to vector<8x1xf32>
    %15 = arith.fptosi %14 : vector<8x1xf32> to vector<8x1xi32>
    %c0_i32 = arith.constant 0 : i32
    %16 = vector.broadcast %c0_i32 : i32 to vector<8x1xi32>
    %17 = arith.cmpi sge, %15, %16 : vector<8x1xi32>
    %c10_i32 = arith.constant 10 : i32
    %18 = vector.broadcast %c10_i32 : i32 to vector<8x1xi32>
    %19 = arith.cmpi sle, %15, %18 : vector<8x1xi32>
    %20 = arith.andi %17, %19 : vector<8x1xi1>
    %21 = arith.extui %20 : vector<8x1xi1> to vector<8x1xi32>
    %22 = arith.sitofp %21 : vector<8x1xi32> to vector<8x1xf32>
    %23 = vector.extract_strided_slice %0 {offsets = [0, 3], sizes = [8, 1], strides = [1, 1]} : vector<8x128xf32> to vector<8x1xf32>
    %24 = arith.mulf %23, %22 : vector<8x1xf32>
    %c0_i32_13 = arith.constant 0 : i32
    %25 = vector.broadcast %c0_i32_13 : i32 to vector<8x1xi32>
    %26 = arith.addi %15, %25 : vector<8x1xi32>
    %27 = vector.broadcast %26 : vector<8x1xi32> to vector<8x32xi32>
    %28 = arith.cmpi eq, %12, %27 : vector<8x32xi32>
    %29 = arith.extui %28 : vector<8x32xi1> to vector<8x32xi32>
    %30 = arith.sitofp %29 : vector<8x32xi32> to vector<8x32xf32>
    %31 = vector.broadcast %24 : vector<8x1xf32> to vector<8x32xf32>
    %32 = arith.mulf %30, %31 : vector<8x32xf32>
    %33 = arith.addf %13, %32 : vector<8x32xf32>
    %34 = vector.extract_strided_slice %0 {offsets = [0, 1], sizes = [8, 1], strides = [1, 1]} : vector<8x128xf32> to vector<8x1xf32>
    %35 = arith.fptosi %34 : vector<8x1xf32> to vector<8x1xi32>
    %c0_i32_14 = arith.constant 0 : i32
    %36 = vector.broadcast %c0_i32_14 : i32 to vector<8x1xi32>
    %37 = arith.cmpi sge, %35, %36 : vector<8x1xi32>
    %c2_i32 = arith.constant 2 : i32
    %38 = vector.broadcast %c2_i32 : i32 to vector<8x1xi32>
    %39 = arith.cmpi sle, %35, %38 : vector<8x1xi32>
    %40 = arith.andi %37, %39 : vector<8x1xi1>
    %41 = arith.extui %40 : vector<8x1xi1> to vector<8x1xi32>
    %42 = arith.sitofp %41 : vector<8x1xi32> to vector<8x1xf32>
    %43 = vector.extract_strided_slice %0 {offsets = [0, 4], sizes = [8, 1], strides = [1, 1]} : vector<8x128xf32> to vector<8x1xf32>
    %44 = arith.mulf %43, %42 : vector<8x1xf32>
    %c11_i32 = arith.constant 11 : i32
    %45 = vector.broadcast %c11_i32 : i32 to vector<8x1xi32>
    %46 = arith.addi %35, %45 : vector<8x1xi32>
    %47 = vector.broadcast %46 : vector<8x1xi32> to vector<8x32xi32>
    %48 = arith.cmpi eq, %12, %47 : vector<8x32xi32>
    %49 = arith.extui %48 : vector<8x32xi1> to vector<8x32xi32>
    %50 = arith.sitofp %49 : vector<8x32xi32> to vector<8x32xf32>
    %51 = vector.broadcast %44 : vector<8x1xf32> to vector<8x32xf32>
    %52 = arith.mulf %50, %51 : vector<8x32xf32>
    %53 = arith.addf %33, %52 : vector<8x32xf32>
    %54 = vector.extract_strided_slice %0 {offsets = [0, 2], sizes = [8, 1], strides = [1, 1]} : vector<8x128xf32> to vector<8x1xf32>
    %55 = arith.fptosi %54 : vector<8x1xf32> to vector<8x1xi32>
    %c0_i32_15 = arith.constant 0 : i32
    %56 = vector.broadcast %c0_i32_15 : i32 to vector<8x1xi32>
    %57 = arith.cmpi sge, %55, %56 : vector<8x1xi32>
    %c12_i32 = arith.constant 12 : i32
    %58 = vector.broadcast %c12_i32 : i32 to vector<8x1xi32>
    %59 = arith.cmpi sle, %55, %58 : vector<8x1xi32>
    %60 = arith.andi %57, %59 : vector<8x1xi1>
    %61 = arith.extui %60 : vector<8x1xi1> to vector<8x1xi32>
    %62 = arith.sitofp %61 : vector<8x1xi32> to vector<8x1xf32>
    %63 = vector.extract_strided_slice %0 {offsets = [0, 5], sizes = [8, 1], strides = [1, 1]} : vector<8x128xf32> to vector<8x1xf32>
    %64 = arith.mulf %63, %62 : vector<8x1xf32>
    %c14_i32 = arith.constant 14 : i32
    %65 = vector.broadcast %c14_i32 : i32 to vector<8x1xi32>
    %66 = arith.addi %55, %65 : vector<8x1xi32>
    %67 = vector.broadcast %66 : vector<8x1xi32> to vector<8x32xi32>
    %68 = arith.cmpi eq, %12, %67 : vector<8x32xi32>
    %69 = arith.extui %68 : vector<8x32xi1> to vector<8x32xi32>
    %70 = arith.sitofp %69 : vector<8x32xi32> to vector<8x32xf32>
    %71 = vector.broadcast %64 : vector<8x1xf32> to vector<8x32xf32>
    %72 = arith.mulf %70, %71 : vector<8x32xf32>
    %73 = arith.addf %53, %72 : vector<8x32xf32>
    %c0_16 = arith.constant 0 : index
    %c0_17 = arith.constant 0 : index
    %74 = vector.load %arg2[%c0_16, %c0_17] : memref<32x128xf32, #tpu.memory_space<vmem>>, vector<32x128xf32>
    %cst_18 = arith.constant dense<0.000000e+00> : vector<8x128xf32>
    %75 = tpu.matmul %73, %74, %cst_18 {dimension_numbers = #tpu.dot_dimension_numbers<[1], [0], [0], [1], [0, 0, 1, 1], [], []>} : vector<8x32xf32>, vector<32x128xf32>, vector<8x128xf32> -> vector<8x128xf32>
    %cst_19 = arith.constant 0.000000e+00 : f32
    %76 = vector.broadcast %cst_19 : f32 to vector<8x32xf32>
    %cst_20 = arith.constant 0.000000e+00 : f32
    %77 = vector.broadcast %cst_20 : f32 to vector<8x32xf32>
    %78 = vector.extract_strided_slice %75 {offsets = [0, 0], sizes = [8, 32], strides = [1, 1]} : vector<8x128xf32> to vector<8x32xf32>
    %79 = arith.addf %76, %78 : vector<8x32xf32>
    %80 = arith.mulf %78, %78 : vector<8x32xf32>
    %81 = arith.addf %77, %80 : vector<8x32xf32>
    %82 = vector.extract_strided_slice %75 {offsets = [0, 32], sizes = [8, 32], strides = [1, 1]} : vector<8x128xf32> to vector<8x32xf32>
    %83 = arith.addf %79, %82 : vector<8x32xf32>
    %84 = arith.mulf %82, %82 : vector<8x32xf32>
    %85 = arith.addf %81, %84 : vector<8x32xf32>
    %86 = vector.extract_strided_slice %75 {offsets = [0, 64], sizes = [8, 32], strides = [1, 1]} : vector<8x128xf32> to vector<8x32xf32>
    %87 = arith.addf %83, %86 : vector<8x32xf32>
    %88 = arith.mulf %86, %86 : vector<8x32xf32>
    %89 = arith.addf %85, %88 : vector<8x32xf32>
    %90 = vector.extract_strided_slice %0 {offsets = [0, 6], sizes = [8, 1], strides = [1, 1]} : vector<8x128xf32> to vector<8x1xf32>
    %91 = vector.broadcast %90 : vector<8x1xf32> to vector<8x32xf32>
    %92 = vector.broadcast %1 : vector<1x32xf32> to vector<8x32xf32>
    %93 = arith.mulf %91, %92 : vector<8x32xf32>
    %94 = vector.broadcast %2 : vector<1x32xf32> to vector<8x32xf32>
    %95 = arith.addf %93, %94 : vector<8x32xf32>
    %96 = vector.extract_strided_slice %0 {offsets = [0, 7], sizes = [8, 1], strides = [1, 1]} : vector<8x128xf32> to vector<8x1xf32>
    %97 = vector.broadcast %96 : vector<8x1xf32> to vector<8x32xf32>
    %98 = arith.mulf %95, %97 : vector<8x32xf32>
    %99 = arith.addf %87, %98 : vector<8x32xf32>
    %100 = arith.mulf %98, %98 : vector<8x32xf32>
    %101 = arith.addf %89, %100 : vector<8x32xf32>
    %102 = vector.extract_strided_slice %0 {offsets = [0, 8], sizes = [8, 7], strides = [1, 1]} : vector<8x128xf32> to vector<8x7xf32>
    %103 = vector.extract_strided_slice %0 {offsets = [0, 15], sizes = [8, 7], strides = [1, 1]} : vector<8x128xf32> to vector<8x7xf32>
    %104 = arith.mulf %102, %103 : vector<8x7xf32>
    %cst_21 = arith.constant dense<0.000000e+00> : vector<8xf32>
    %105 = vector.multi_reduction <add>, %104, %cst_21 [1] : vector<8x7xf32> to vector<8xf32>
    %106 = vector.shape_cast %105 : vector<8xf32> to vector<8x1xf32>
    %cst_22 = arith.constant dense<0.000000e+00> : vector<8xf32>
    %107 = vector.multi_reduction <add>, %103, %cst_22 [1] : vector<8x7xf32> to vector<8xf32>
    %108 = vector.shape_cast %107 : vector<8xf32> to vector<8x1xf32>
    %109 = arith.mulf %104, %104 : vector<8x7xf32>
    %cst_23 = arith.constant dense<0.000000e+00> : vector<8xf32>
    %110 = vector.multi_reduction <add>, %109, %cst_23 [1] : vector<8x7xf32> to vector<8xf32>
    %111 = vector.shape_cast %110 : vector<8xf32> to vector<8x1xf32>
    %112 = arith.mulf %104, %103 : vector<8x7xf32>
    %cst_24 = arith.constant dense<0.000000e+00> : vector<8xf32>
    %113 = vector.multi_reduction <add>, %112, %cst_24 [1] : vector<8x7xf32> to vector<8xf32>
    %114 = vector.shape_cast %113 : vector<8xf32> to vector<8x1xf32>
    %115 = arith.mulf %103, %103 : vector<8x7xf32>
    %cst_25 = arith.constant dense<0.000000e+00> : vector<8xf32>
    %116 = vector.multi_reduction <add>, %115, %cst_25 [1] : vector<8x7xf32> to vector<8xf32>
    %117 = vector.shape_cast %116 : vector<8xf32> to vector<8x1xf32>
    %118 = vector.broadcast %106 : vector<8x1xf32> to vector<8x32xf32>
    %119 = vector.broadcast %3 : vector<1x32xf32> to vector<8x32xf32>
    %120 = arith.mulf %118, %119 : vector<8x32xf32>
    %121 = arith.addf %99, %120 : vector<8x32xf32>
    %122 = vector.broadcast %108 : vector<8x1xf32> to vector<8x32xf32>
    %123 = vector.broadcast %4 : vector<1x32xf32> to vector<8x32xf32>
    %124 = arith.mulf %122, %123 : vector<8x32xf32>
    %125 = arith.addf %121, %124 : vector<8x32xf32>
    %126 = vector.broadcast %111 : vector<8x1xf32> to vector<8x32xf32>
    %127 = vector.broadcast %5 : vector<1x32xf32> to vector<8x32xf32>
    %128 = arith.mulf %126, %127 : vector<8x32xf32>
    %129 = arith.addf %101, %128 : vector<8x32xf32>
    %cst_26 = arith.constant 2.000000e+00 : f32
    %130 = vector.broadcast %cst_26 : f32 to vector<8x1xf32>
    %131 = arith.mulf %130, %114 : vector<8x1xf32>
    %132 = vector.broadcast %131 : vector<8x1xf32> to vector<8x32xf32>
    %133 = vector.broadcast %6 : vector<1x32xf32> to vector<8x32xf32>
    %134 = arith.mulf %132, %133 : vector<8x32xf32>
    %135 = arith.addf %129, %134 : vector<8x32xf32>
    %136 = vector.broadcast %117 : vector<8x1xf32> to vector<8x32xf32>
    %137 = vector.broadcast %7 : vector<1x32xf32> to vector<8x32xf32>
    %138 = arith.mulf %136, %137 : vector<8x32xf32>
    %139 = arith.addf %135, %138 : vector<8x32xf32>
    %c0_27 = arith.constant 0 : index
    %c0_28 = arith.constant 0 : index
    %140 = vector.load %arg5[%c0_27, %c0_28] : memref<8x256xf32, #tpu.memory_space<vmem>>, vector<1x256xf32>
    %c1_29 = arith.constant 1 : index
    %c0_30 = arith.constant 0 : index
    %141 = vector.load %arg5[%c1_29, %c0_30] : memref<8x256xf32, #tpu.memory_space<vmem>>, vector<1x256xf32>
    %c2_31 = arith.constant 2 : index
    %c0_32 = arith.constant 0 : index
    %142 = vector.load %arg5[%c2_31, %c0_32] : memref<8x256xf32, #tpu.memory_space<vmem>>, vector<1x256xf32>
    %c3_33 = arith.constant 3 : index
    %c0_34 = arith.constant 0 : index
    %143 = vector.load %arg5[%c3_33, %c0_34] : memref<8x256xf32, #tpu.memory_space<vmem>>, vector<1x256xf32>
    %c4_35 = arith.constant 4 : index
    %c0_36 = arith.constant 0 : index
    %144 = vector.load %arg5[%c4_35, %c0_36] : memref<8x256xf32, #tpu.memory_space<vmem>>, vector<1x256xf32>
    %145 = vector.extract_strided_slice %0 {offsets = [0, 22], sizes = [8, 6], strides = [1, 1]} : vector<8x128xf32> to vector<8x6xf32>
    %146 = vector.extract_strided_slice %0 {offsets = [0, 28], sizes = [8, 6], strides = [1, 1]} : vector<8x128xf32> to vector<8x6xf32>
    %147 = vector.extract_strided_slice %0 {offsets = [0, 34], sizes = [8, 5], strides = [1, 1]} : vector<8x128xf32> to vector<8x5xf32>
    %148 = vector.extract_strided_slice %0 {offsets = [0, 39], sizes = [8, 5], strides = [1, 1]} : vector<8x128xf32> to vector<8x5xf32>
    %149 = vector.extract_strided_slice %146 {offsets = [0, 0], sizes = [8, 1], strides = [1, 1]} : vector<8x6xf32> to vector<8x1xf32>
    %150 = vector.extract_strided_slice %145 {offsets = [0, 0], sizes = [8, 1], strides = [1, 1]} : vector<8x6xf32> to vector<8x1xf32>
    %151 = vector.broadcast %150 : vector<8x1xf32> to vector<8x256xf32>
    %152 = vector.broadcast %140 : vector<1x256xf32> to vector<8x256xf32>
    %153 = arith.mulf %151, %152 : vector<8x256xf32>
    %154 = vector.broadcast %141 : vector<1x256xf32> to vector<8x256xf32>
    %155 = arith.addf %153, %154 : vector<8x256xf32>
    %156 = vector.broadcast %149 : vector<8x1xf32> to vector<8x256xf32>
    %157 = arith.mulf %156, %155 : vector<8x256xf32>
    %158 = vector.extract_strided_slice %148 {offsets = [0, 0], sizes = [8, 1], strides = [1, 1]} : vector<8x5xf32> to vector<8x1xf32>
    %159 = vector.extract_strided_slice %147 {offsets = [0, 0], sizes = [8, 1], strides = [1, 1]} : vector<8x5xf32> to vector<8x1xf32>
    %160 = vector.broadcast %159 : vector<8x1xf32> to vector<8x256xf32>
    %161 = vector.broadcast %142 : vector<1x256xf32> to vector<8x256xf32>
    %162 = arith.mulf %160, %161 : vector<8x256xf32>
    %163 = vector.broadcast %143 : vector<1x256xf32> to vector<8x256xf32>
    %164 = arith.addf %162, %163 : vector<8x256xf32>
    %165 = vector.broadcast %158 : vector<8x1xf32> to vector<8x256xf32>
    %166 = arith.mulf %165, %164 : vector<8x256xf32>
    %167 = arith.addf %157, %166 : vector<8x256xf32>
    %168 = vector.extract_strided_slice %146 {offsets = [0, 1], sizes = [8, 1], strides = [1, 1]} : vector<8x6xf32> to vector<8x1xf32>
    %169 = vector.extract_strided_slice %145 {offsets = [0, 1], sizes = [8, 1], strides = [1, 1]} : vector<8x6xf32> to vector<8x1xf32>
    %170 = vector.broadcast %169 : vector<8x1xf32> to vector<8x256xf32>
    %171 = vector.broadcast %140 : vector<1x256xf32> to vector<8x256xf32>
    %172 = arith.mulf %170, %171 : vector<8x256xf32>
    %173 = vector.broadcast %141 : vector<1x256xf32> to vector<8x256xf32>
    %174 = arith.addf %172, %173 : vector<8x256xf32>
    %175 = vector.broadcast %168 : vector<8x1xf32> to vector<8x256xf32>
    %176 = arith.mulf %175, %174 : vector<8x256xf32>
    %177 = vector.extract_strided_slice %148 {offsets = [0, 1], sizes = [8, 1], strides = [1, 1]} : vector<8x5xf32> to vector<8x1xf32>
    %178 = vector.extract_strided_slice %147 {offsets = [0, 1], sizes = [8, 1], strides = [1, 1]} : vector<8x5xf32> to vector<8x1xf32>
    %179 = vector.broadcast %178 : vector<8x1xf32> to vector<8x256xf32>
    %180 = vector.broadcast %142 : vector<1x256xf32> to vector<8x256xf32>
    %181 = arith.mulf %179, %180 : vector<8x256xf32>
    %182 = vector.broadcast %143 : vector<1x256xf32> to vector<8x256xf32>
    %183 = arith.addf %181, %182 : vector<8x256xf32>
    %184 = vector.broadcast %177 : vector<8x1xf32> to vector<8x256xf32>
    %185 = arith.mulf %184, %183 : vector<8x256xf32>
    %186 = arith.addf %176, %185 : vector<8x256xf32>
    %187 = vector.extract_strided_slice %146 {offsets = [0, 2], sizes = [8, 1], strides = [1, 1]} : vector<8x6xf32> to vector<8x1xf32>
    %188 = vector.extract_strided_slice %145 {offsets = [0, 2], sizes = [8, 1], strides = [1, 1]} : vector<8x6xf32> to vector<8x1xf32>
    %189 = vector.broadcast %188 : vector<8x1xf32> to vector<8x256xf32>
    %190 = vector.broadcast %140 : vector<1x256xf32> to vector<8x256xf32>
    %191 = arith.mulf %189, %190 : vector<8x256xf32>
    %192 = vector.broadcast %141 : vector<1x256xf32> to vector<8x256xf32>
    %193 = arith.addf %191, %192 : vector<8x256xf32>
    %194 = vector.broadcast %187 : vector<8x1xf32> to vector<8x256xf32>
    %195 = arith.mulf %194, %193 : vector<8x256xf32>
    %196 = vector.extract_strided_slice %148 {offsets = [0, 2], sizes = [8, 1], strides = [1, 1]} : vector<8x5xf32> to vector<8x1xf32>
    %197 = vector.extract_strided_slice %147 {offsets = [0, 2], sizes = [8, 1], strides = [1, 1]} : vector<8x5xf32> to vector<8x1xf32>
    %198 = vector.broadcast %197 : vector<8x1xf32> to vector<8x256xf32>
    %199 = vector.broadcast %142 : vector<1x256xf32> to vector<8x256xf32>
    %200 = arith.mulf %198, %199 : vector<8x256xf32>
    %201 = vector.broadcast %143 : vector<1x256xf32> to vector<8x256xf32>
    %202 = arith.addf %200, %201 : vector<8x256xf32>
    %203 = vector.broadcast %196 : vector<8x1xf32> to vector<8x256xf32>
    %204 = arith.mulf %203, %202 : vector<8x256xf32>
    %205 = arith.addf %195, %204 : vector<8x256xf32>
    %206 = vector.extract_strided_slice %146 {offsets = [0, 3], sizes = [8, 1], strides = [1, 1]} : vector<8x6xf32> to vector<8x1xf32>
    %207 = vector.extract_strided_slice %145 {offsets = [0, 3], sizes = [8, 1], strides = [1, 1]} : vector<8x6xf32> to vector<8x1xf32>
    %208 = vector.broadcast %207 : vector<8x1xf32> to vector<8x256xf32>
    %209 = vector.broadcast %140 : vector<1x256xf32> to vector<8x256xf32>
    %210 = arith.mulf %208, %209 : vector<8x256xf32>
    %211 = vector.broadcast %141 : vector<1x256xf32> to vector<8x256xf32>
    %212 = arith.addf %210, %211 : vector<8x256xf32>
    %213 = vector.broadcast %206 : vector<8x1xf32> to vector<8x256xf32>
    %214 = arith.mulf %213, %212 : vector<8x256xf32>
    %215 = vector.extract_strided_slice %148 {offsets = [0, 3], sizes = [8, 1], strides = [1, 1]} : vector<8x5xf32> to vector<8x1xf32>
    %216 = vector.extract_strided_slice %147 {offsets = [0, 3], sizes = [8, 1], strides = [1, 1]} : vector<8x5xf32> to vector<8x1xf32>
    %217 = vector.broadcast %216 : vector<8x1xf32> to vector<8x256xf32>
    %218 = vector.broadcast %142 : vector<1x256xf32> to vector<8x256xf32>
    %219 = arith.mulf %217, %218 : vector<8x256xf32>
    %220 = vector.broadcast %143 : vector<1x256xf32> to vector<8x256xf32>
    %221 = arith.addf %219, %220 : vector<8x256xf32>
    %222 = vector.broadcast %215 : vector<8x1xf32> to vector<8x256xf32>
    %223 = arith.mulf %222, %221 : vector<8x256xf32>
    %224 = arith.addf %214, %223 : vector<8x256xf32>
    %225 = vector.extract_strided_slice %146 {offsets = [0, 4], sizes = [8, 1], strides = [1, 1]} : vector<8x6xf32> to vector<8x1xf32>
    %226 = vector.extract_strided_slice %145 {offsets = [0, 4], sizes = [8, 1], strides = [1, 1]} : vector<8x6xf32> to vector<8x1xf32>
    %227 = vector.broadcast %226 : vector<8x1xf32> to vector<8x256xf32>
    %228 = vector.broadcast %140 : vector<1x256xf32> to vector<8x256xf32>
    %229 = arith.mulf %227, %228 : vector<8x256xf32>
    %230 = vector.broadcast %141 : vector<1x256xf32> to vector<8x256xf32>
    %231 = arith.addf %229, %230 : vector<8x256xf32>
    %232 = vector.broadcast %225 : vector<8x1xf32> to vector<8x256xf32>
    %233 = arith.mulf %232, %231 : vector<8x256xf32>
    %234 = vector.extract_strided_slice %148 {offsets = [0, 4], sizes = [8, 1], strides = [1, 1]} : vector<8x5xf32> to vector<8x1xf32>
    %235 = vector.extract_strided_slice %147 {offsets = [0, 4], sizes = [8, 1], strides = [1, 1]} : vector<8x5xf32> to vector<8x1xf32>
    %236 = vector.broadcast %235 : vector<8x1xf32> to vector<8x256xf32>
    %237 = vector.broadcast %142 : vector<1x256xf32> to vector<8x256xf32>
    %238 = arith.mulf %236, %237 : vector<8x256xf32>
    %239 = vector.broadcast %143 : vector<1x256xf32> to vector<8x256xf32>
    %240 = arith.addf %238, %239 : vector<8x256xf32>
    %241 = vector.broadcast %234 : vector<8x1xf32> to vector<8x256xf32>
    %242 = arith.mulf %241, %240 : vector<8x256xf32>
    %243 = arith.addf %233, %242 : vector<8x256xf32>
    %c0_37 = arith.constant 0 : index
    %c0_38 = arith.constant 0 : index
    %244 = vector.load %arg4[%c0_37, %c0_38] : memref<8x128xf32, #tpu.memory_space<vmem>>, vector<1x128xf32>
    %c1_39 = arith.constant 1 : index
    %c0_40 = arith.constant 0 : index
    %245 = vector.load %arg4[%c1_39, %c0_40] : memref<8x128xf32, #tpu.memory_space<vmem>>, vector<1x128xf32>
    %c2_41 = arith.constant 2 : index
    %c0_42 = arith.constant 0 : index
    %246 = vector.load %arg4[%c2_41, %c0_42] : memref<8x128xf32, #tpu.memory_space<vmem>>, vector<1x128xf32>
    %247 = vector.extract_strided_slice %146 {offsets = [0, 5], sizes = [8, 1], strides = [1, 1]} : vector<8x6xf32> to vector<8x1xf32>
    %248 = vector.extract_strided_slice %145 {offsets = [0, 5], sizes = [8, 1], strides = [1, 1]} : vector<8x6xf32> to vector<8x1xf32>
    %249 = vector.broadcast %248 : vector<8x1xf32> to vector<8x128xf32>
    %250 = vector.broadcast %244 : vector<1x128xf32> to vector<8x128xf32>
    %251 = arith.mulf %249, %250 : vector<8x128xf32>
    %252 = vector.broadcast %245 : vector<1x128xf32> to vector<8x128xf32>
    %253 = arith.addf %251, %252 : vector<8x128xf32>
    %254 = vector.broadcast %247 : vector<8x1xf32> to vector<8x128xf32>
    %255 = arith.mulf %254, %253 : vector<8x128xf32>
    %c0_43 = arith.constant 0 : index
    %c0_44 = arith.constant 0 : index
    %256 = vector.load %arg6[%c0_43, %c0_44] : memref<64x256xbf16, #tpu.memory_space<vmem>>, vector<64x256xbf16>
    %cst_45 = arith.constant 0.000000e+00 : f32
    %257 = vector.broadcast %cst_45 : f32 to vector<8x64xf32>
    %cst_46 = arith.constant 0.000000e+00 : f32
    %258 = vector.broadcast %cst_46 : f32 to vector<8x64xf32>
    %259 = arith.truncf %257 : vector<8x64xf32> to vector<8x64xbf16>
    %cst_47 = arith.constant dense<0.000000e+00> : vector<8x256xf32>
    %260 = tpu.matmul %259, %256, %cst_47 {dimension_numbers = #tpu.dot_dimension_numbers<[1], [0], [0], [1], [0, 0, 1, 1], [], []>} : vector<8x64xbf16>, vector<64x256xbf16>, vector<8x256xf32> -> vector<8x256xf32>
    %261 = arith.addf %167, %260 : vector<8x256xf32>
    %262 = vector.broadcast %144 : vector<1x256xf32> to vector<8x256xf32>
    %263 = arith.addf %261, %262 : vector<8x256xf32>
    %264 = vector.extract_strided_slice %263 {offsets = [0, 0], sizes = [8, 192], strides = [1, 1]} : vector<8x256xf32> to vector<8x192xf32>
    %265 = arith.negf %264 : vector<8x192xf32>
    %266 = math.exp %265 : vector<8x192xf32>
    %cst_48 = arith.constant 1.000000e+00 : f32
    %267 = vector.broadcast %cst_48 : f32 to vector<8x192xf32>
    %268 = arith.addf %267, %266 : vector<8x192xf32>
    %269 = arith.divf %267, %268 : vector<8x192xf32>
    %270 = vector.extract_strided_slice %263 {offsets = [0, 192], sizes = [8, 64], strides = [1, 1]} : vector<8x256xf32> to vector<8x64xf32>
    %271 = math.tanh %270 : vector<8x64xf32>
    %272 = vector.extract_strided_slice %269 {offsets = [0, 0], sizes = [8, 64], strides = [1, 1]} : vector<8x192xf32> to vector<8x64xf32>
    %273 = vector.extract_strided_slice %269 {offsets = [0, 64], sizes = [8, 64], strides = [1, 1]} : vector<8x192xf32> to vector<8x64xf32>
    %274 = vector.extract_strided_slice %269 {offsets = [0, 128], sizes = [8, 64], strides = [1, 1]} : vector<8x192xf32> to vector<8x64xf32>
    %275 = arith.mulf %273, %258 : vector<8x64xf32>
    %276 = arith.mulf %272, %271 : vector<8x64xf32>
    %277 = arith.addf %275, %276 : vector<8x64xf32>
    %278 = math.tanh %277 : vector<8x64xf32>
    %279 = arith.mulf %274, %278 : vector<8x64xf32>
    %280 = arith.truncf %279 : vector<8x64xf32> to vector<8x64xbf16>
    %cst_49 = arith.constant dense<0.000000e+00> : vector<8x256xf32>
    %281 = tpu.matmul %280, %256, %cst_49 {dimension_numbers = #tpu.dot_dimension_numbers<[1], [0], [0], [1], [0, 0, 1, 1], [], []>} : vector<8x64xbf16>, vector<64x256xbf16>, vector<8x256xf32> -> vector<8x256xf32>
    %282 = arith.addf %186, %281 : vector<8x256xf32>
    %283 = vector.broadcast %144 : vector<1x256xf32> to vector<8x256xf32>
    %284 = arith.addf %282, %283 : vector<8x256xf32>
    %285 = vector.extract_strided_slice %284 {offsets = [0, 0], sizes = [8, 192], strides = [1, 1]} : vector<8x256xf32> to vector<8x192xf32>
    %286 = arith.negf %285 : vector<8x192xf32>
    %287 = math.exp %286 : vector<8x192xf32>
    %cst_50 = arith.constant 1.000000e+00 : f32
    %288 = vector.broadcast %cst_50 : f32 to vector<8x192xf32>
    %289 = arith.addf %288, %287 : vector<8x192xf32>
    %290 = arith.divf %288, %289 : vector<8x192xf32>
    %291 = vector.extract_strided_slice %284 {offsets = [0, 192], sizes = [8, 64], strides = [1, 1]} : vector<8x256xf32> to vector<8x64xf32>
    %292 = math.tanh %291 : vector<8x64xf32>
    %293 = vector.extract_strided_slice %290 {offsets = [0, 0], sizes = [8, 64], strides = [1, 1]} : vector<8x192xf32> to vector<8x64xf32>
    %294 = vector.extract_strided_slice %290 {offsets = [0, 64], sizes = [8, 64], strides = [1, 1]} : vector<8x192xf32> to vector<8x64xf32>
    %295 = vector.extract_strided_slice %290 {offsets = [0, 128], sizes = [8, 64], strides = [1, 1]} : vector<8x192xf32> to vector<8x64xf32>
    %296 = arith.mulf %294, %277 : vector<8x64xf32>
    %297 = arith.mulf %293, %292 : vector<8x64xf32>
    %298 = arith.addf %296, %297 : vector<8x64xf32>
    %299 = math.tanh %298 : vector<8x64xf32>
    %300 = arith.mulf %295, %299 : vector<8x64xf32>
    %301 = arith.truncf %300 : vector<8x64xf32> to vector<8x64xbf16>
    %cst_51 = arith.constant dense<0.000000e+00> : vector<8x256xf32>
    %302 = tpu.matmul %301, %256, %cst_51 {dimension_numbers = #tpu.dot_dimension_numbers<[1], [0], [0], [1], [0, 0, 1, 1], [], []>} : vector<8x64xbf16>, vector<64x256xbf16>, vector<8x256xf32> -> vector<8x256xf32>
    %303 = arith.addf %205, %302 : vector<8x256xf32>
    %304 = vector.broadcast %144 : vector<1x256xf32> to vector<8x256xf32>
    %305 = arith.addf %303, %304 : vector<8x256xf32>
    %306 = vector.extract_strided_slice %305 {offsets = [0, 0], sizes = [8, 192], strides = [1, 1]} : vector<8x256xf32> to vector<8x192xf32>
    %307 = arith.negf %306 : vector<8x192xf32>
    %308 = math.exp %307 : vector<8x192xf32>
    %cst_52 = arith.constant 1.000000e+00 : f32
    %309 = vector.broadcast %cst_52 : f32 to vector<8x192xf32>
    %310 = arith.addf %309, %308 : vector<8x192xf32>
    %311 = arith.divf %309, %310 : vector<8x192xf32>
    %312 = vector.extract_strided_slice %305 {offsets = [0, 192], sizes = [8, 64], strides = [1, 1]} : vector<8x256xf32> to vector<8x64xf32>
    %313 = math.tanh %312 : vector<8x64xf32>
    %314 = vector.extract_strided_slice %311 {offsets = [0, 0], sizes = [8, 64], strides = [1, 1]} : vector<8x192xf32> to vector<8x64xf32>
    %315 = vector.extract_strided_slice %311 {offsets = [0, 64], sizes = [8, 64], strides = [1, 1]} : vector<8x192xf32> to vector<8x64xf32>
    %316 = vector.extract_strided_slice %311 {offsets = [0, 128], sizes = [8, 64], strides = [1, 1]} : vector<8x192xf32> to vector<8x64xf32>
    %317 = arith.mulf %315, %298 : vector<8x64xf32>
    %318 = arith.mulf %314, %313 : vector<8x64xf32>
    %319 = arith.addf %317, %318 : vector<8x64xf32>
    %320 = math.tanh %319 : vector<8x64xf32>
    %321 = arith.mulf %316, %320 : vector<8x64xf32>
    %322 = arith.truncf %321 : vector<8x64xf32> to vector<8x64xbf16>
    %cst_53 = arith.constant dense<0.000000e+00> : vector<8x256xf32>
    %323 = tpu.matmul %322, %256, %cst_53 {dimension_numbers = #tpu.dot_dimension_numbers<[1], [0], [0], [1], [0, 0, 1, 1], [], []>} : vector<8x64xbf16>, vector<64x256xbf16>, vector<8x256xf32> -> vector<8x256xf32>
    %324 = arith.addf %224, %323 : vector<8x256xf32>
    %325 = vector.broadcast %144 : vector<1x256xf32> to vector<8x256xf32>
    %326 = arith.addf %324, %325 : vector<8x256xf32>
    %327 = vector.extract_strided_slice %326 {offsets = [0, 0], sizes = [8, 192], strides = [1, 1]} : vector<8x256xf32> to vector<8x192xf32>
    %328 = arith.negf %327 : vector<8x192xf32>
    %329 = math.exp %328 : vector<8x192xf32>
    %cst_54 = arith.constant 1.000000e+00 : f32
    %330 = vector.broadcast %cst_54 : f32 to vector<8x192xf32>
    %331 = arith.addf %330, %329 : vector<8x192xf32>
    %332 = arith.divf %330, %331 : vector<8x192xf32>
    %333 = vector.extract_strided_slice %326 {offsets = [0, 192], sizes = [8, 64], strides = [1, 1]} : vector<8x256xf32> to vector<8x64xf32>
    %334 = math.tanh %333 : vector<8x64xf32>
    %335 = vector.extract_strided_slice %332 {offsets = [0, 0], sizes = [8, 64], strides = [1, 1]} : vector<8x192xf32> to vector<8x64xf32>
    %336 = vector.extract_strided_slice %332 {offsets = [0, 64], sizes = [8, 64], strides = [1, 1]} : vector<8x192xf32> to vector<8x64xf32>
    %337 = vector.extract_strided_slice %332 {offsets = [0, 128], sizes = [8, 64], strides = [1, 1]} : vector<8x192xf32> to vector<8x64xf32>
    %338 = arith.mulf %336, %319 : vector<8x64xf32>
    %339 = arith.mulf %335, %334 : vector<8x64xf32>
    %340 = arith.addf %338, %339 : vector<8x64xf32>
    %341 = math.tanh %340 : vector<8x64xf32>
    %342 = arith.mulf %337, %341 : vector<8x64xf32>
    %343 = arith.truncf %342 : vector<8x64xf32> to vector<8x64xbf16>
    %cst_55 = arith.constant dense<0.000000e+00> : vector<8x256xf32>
    %344 = tpu.matmul %343, %256, %cst_55 {dimension_numbers = #tpu.dot_dimension_numbers<[1], [0], [0], [1], [0, 0, 1, 1], [], []>} : vector<8x64xbf16>, vector<64x256xbf16>, vector<8x256xf32> -> vector<8x256xf32>
    %345 = arith.addf %243, %344 : vector<8x256xf32>
    %346 = vector.broadcast %144 : vector<1x256xf32> to vector<8x256xf32>
    %347 = arith.addf %345, %346 : vector<8x256xf32>
    %348 = vector.extract_strided_slice %347 {offsets = [0, 0], sizes = [8, 192], strides = [1, 1]} : vector<8x256xf32> to vector<8x192xf32>
    %349 = arith.negf %348 : vector<8x192xf32>
    %350 = math.exp %349 : vector<8x192xf32>
    %cst_56 = arith.constant 1.000000e+00 : f32
    %351 = vector.broadcast %cst_56 : f32 to vector<8x192xf32>
    %352 = arith.addf %351, %350 : vector<8x192xf32>
    %353 = arith.divf %351, %352 : vector<8x192xf32>
    %354 = vector.extract_strided_slice %347 {offsets = [0, 192], sizes = [8, 64], strides = [1, 1]} : vector<8x256xf32> to vector<8x64xf32>
    %355 = math.tanh %354 : vector<8x64xf32>
    %356 = vector.extract_strided_slice %353 {offsets = [0, 0], sizes = [8, 64], strides = [1, 1]} : vector<8x192xf32> to vector<8x64xf32>
    %357 = vector.extract_strided_slice %353 {offsets = [0, 64], sizes = [8, 64], strides = [1, 1]} : vector<8x192xf32> to vector<8x64xf32>
    %358 = vector.extract_strided_slice %353 {offsets = [0, 128], sizes = [8, 64], strides = [1, 1]} : vector<8x192xf32> to vector<8x64xf32>
    %359 = arith.mulf %357, %340 : vector<8x64xf32>
    %360 = arith.mulf %356, %355 : vector<8x64xf32>
    %361 = arith.addf %359, %360 : vector<8x64xf32>
    %362 = math.tanh %361 : vector<8x64xf32>
    %363 = arith.mulf %358, %362 : vector<8x64xf32>
    %364 = vector.extract_strided_slice %363 {offsets = [0, 0], sizes = [8, 32], strides = [1, 1]} : vector<8x64xf32> to vector<8x32xf32>
    %365 = vector.extract_strided_slice %361 {offsets = [0, 0], sizes = [8, 32], strides = [1, 1]} : vector<8x64xf32> to vector<8x32xf32>
    %366 = vector.extract_strided_slice %363 {offsets = [0, 32], sizes = [8, 32], strides = [1, 1]} : vector<8x64xf32> to vector<8x32xf32>
    %367 = arith.truncf %364 : vector<8x32xf32> to vector<8x32xbf16>
    %c0_57 = arith.constant 0 : index
    %c0_58 = arith.constant 0 : index
    %368 = vector.load %arg7[%c0_57, %c0_58] : memref<32x128xbf16, #tpu.memory_space<vmem>>, vector<32x128xbf16>
    %cst_59 = arith.constant dense<0.000000e+00> : vector<8x128xf32>
    %369 = tpu.matmul %367, %368, %cst_59 {dimension_numbers = #tpu.dot_dimension_numbers<[1], [0], [0], [1], [0, 0, 1, 1], [], []>} : vector<8x32xbf16>, vector<32x128xbf16>, vector<8x128xf32> -> vector<8x128xf32>
    %370 = arith.addf %255, %369 : vector<8x128xf32>
    %371 = vector.broadcast %246 : vector<1x128xf32> to vector<8x128xf32>
    %372 = arith.addf %370, %371 : vector<8x128xf32>
    %373 = vector.extract_strided_slice %372 {offsets = [0, 0], sizes = [8, 96], strides = [1, 1]} : vector<8x128xf32> to vector<8x96xf32>
    %374 = arith.negf %373 : vector<8x96xf32>
    %375 = math.exp %374 : vector<8x96xf32>
    %cst_60 = arith.constant 1.000000e+00 : f32
    %376 = vector.broadcast %cst_60 : f32 to vector<8x96xf32>
    %377 = arith.addf %376, %375 : vector<8x96xf32>
    %378 = arith.divf %376, %377 : vector<8x96xf32>
    %379 = vector.extract_strided_slice %372 {offsets = [0, 96], sizes = [8, 32], strides = [1, 1]} : vector<8x128xf32> to vector<8x32xf32>
    %380 = math.tanh %379 : vector<8x32xf32>
    %381 = vector.extract_strided_slice %378 {offsets = [0, 0], sizes = [8, 32], strides = [1, 1]} : vector<8x96xf32> to vector<8x32xf32>
    %382 = vector.extract_strided_slice %378 {offsets = [0, 32], sizes = [8, 32], strides = [1, 1]} : vector<8x96xf32> to vector<8x32xf32>
    %383 = vector.extract_strided_slice %378 {offsets = [0, 64], sizes = [8, 32], strides = [1, 1]} : vector<8x96xf32> to vector<8x32xf32>
    %384 = arith.mulf %382, %365 : vector<8x32xf32>
    %385 = arith.mulf %381, %380 : vector<8x32xf32>
    %386 = arith.addf %384, %385 : vector<8x32xf32>
    %387 = math.tanh %386 : vector<8x32xf32>
    %388 = arith.mulf %383, %387 : vector<8x32xf32>
    %389 = arith.addf %125, %388 : vector<8x32xf32>
    %390 = arith.addf %389, %366 : vector<8x32xf32>
    %391 = arith.mulf %388, %388 : vector<8x32xf32>
    %392 = arith.addf %139, %391 : vector<8x32xf32>
    %393 = arith.mulf %366, %366 : vector<8x32xf32>
    %394 = arith.addf %392, %393 : vector<8x32xf32>
    %395 = arith.mulf %390, %390 : vector<8x32xf32>
    %396 = arith.subf %395, %394 : vector<8x32xf32>
    %cst_61 = arith.constant 5.000000e-01 : f32
    %397 = vector.broadcast %cst_61 : f32 to vector<8x32xf32>
    %398 = arith.mulf %397, %396 : vector<8x32xf32>
    %399 = vector.broadcast %10 : vector<1x32xf32> to vector<8x32xf32>
    %400 = arith.subf %398, %399 : vector<8x32xf32>
    %cst_62 = arith.constant 9.99999974E-6 : f32
    %401 = vector.broadcast %cst_62 : f32 to vector<1x32xf32>
    %402 = arith.addf %11, %401 : vector<1x32xf32>
    %403 = math.rsqrt %402 : vector<1x32xf32>
    %404 = vector.broadcast %403 : vector<1x32xf32> to vector<8x32xf32>
    %405 = arith.mulf %400, %404 : vector<8x32xf32>
    %406 = vector.broadcast %8 : vector<1x32xf32> to vector<8x32xf32>
    %407 = arith.mulf %405, %406 : vector<8x32xf32>
    %408 = vector.broadcast %9 : vector<1x32xf32> to vector<8x32xf32>
    %409 = arith.addf %407, %408 : vector<8x32xf32>
    %c0_63 = arith.constant 0 : index
    %c0_64 = arith.constant 0 : index
    %c0_65 = arith.constant 0 : index
    %410 = vector.load %arg8[%c0_63, %c0_64, %c0_65] : memref<5x128x128xbf16, #tpu.memory_space<vmem>>, vector<1x32x128xbf16>
    %411 = vector.shape_cast %410 : vector<1x32x128xbf16> to vector<32x128xbf16>
    %412 = arith.truncf %409 : vector<8x32xf32> to vector<8x32xbf16>
    %cst_66 = arith.constant dense<0.000000e+00> : vector<8x128xf32>
    %413 = tpu.matmul %412, %411, %cst_66 {dimension_numbers = #tpu.dot_dimension_numbers<[1], [0], [0], [1], [0, 0, 1, 1], [], []>} : vector<8x32xbf16>, vector<32x128xbf16>, vector<8x128xf32> -> vector<8x128xf32>
    %c0_67 = arith.constant 0 : index
    %c0_68 = arith.constant 0 : index
    %414 = vector.load %arg9[%c0_67, %c0_68] : memref<5x128xf32, #tpu.memory_space<vmem>>, vector<1x128xf32>
    %415 = vector.broadcast %414 : vector<1x128xf32> to vector<8x128xf32>
    %416 = arith.addf %413, %415 : vector<8x128xf32>
    %cst_69 = arith.constant 0.000000e+00 : f32
    %417 = vector.broadcast %cst_69 : f32 to vector<8x128xf32>
    %418 = arith.maximumf %416, %417 : vector<8x128xf32>
    %c1_70 = arith.constant 1 : index
    %c0_71 = arith.constant 0 : index
    %c0_72 = arith.constant 0 : index
    %419 = vector.load %arg8[%c1_70, %c0_71, %c0_72] : memref<5x128x128xbf16, #tpu.memory_space<vmem>>, vector<1x128x128xbf16>
    %420 = vector.shape_cast %419 : vector<1x128x128xbf16> to vector<128x128xbf16>
    %421 = arith.truncf %418 : vector<8x128xf32> to vector<8x128xbf16>
    %cst_73 = arith.constant dense<0.000000e+00> : vector<8x128xf32>
    %422 = tpu.matmul %421, %420, %cst_73 {dimension_numbers = #tpu.dot_dimension_numbers<[1], [0], [0], [1], [0, 0, 1, 1], [], []>} : vector<8x128xbf16>, vector<128x128xbf16>, vector<8x128xf32> -> vector<8x128xf32>
    %c1_74 = arith.constant 1 : index
    %c0_75 = arith.constant 0 : index
    %423 = vector.load %arg9[%c1_74, %c0_75] : memref<5x128xf32, #tpu.memory_space<vmem>>, vector<1x128xf32>
    %424 = vector.broadcast %423 : vector<1x128xf32> to vector<8x128xf32>
    %425 = arith.addf %422, %424 : vector<8x128xf32>
    %cst_76 = arith.constant 0.000000e+00 : f32
    %426 = vector.broadcast %cst_76 : f32 to vector<8x128xf32>
    %427 = arith.maximumf %425, %426 : vector<8x128xf32>
    %428 = vector.extract_strided_slice %427 {offsets = [0, 0], sizes = [8, 64], strides = [1, 1]} : vector<8x128xf32> to vector<8x64xf32>
    %c2_77 = arith.constant 2 : index
    %c0_78 = arith.constant 0 : index
    %c0_79 = arith.constant 0 : index
    %429 = vector.load %arg8[%c2_77, %c0_78, %c0_79] : memref<5x128x128xbf16, #tpu.memory_space<vmem>>, vector<1x64x128xbf16>
    %430 = vector.shape_cast %429 : vector<1x64x128xbf16> to vector<64x128xbf16>
    %431 = arith.truncf %428 : vector<8x64xf32> to vector<8x64xbf16>
    %cst_80 = arith.constant dense<0.000000e+00> : vector<8x128xf32>
    %432 = tpu.matmul %431, %430, %cst_80 {dimension_numbers = #tpu.dot_dimension_numbers<[1], [0], [0], [1], [0, 0, 1, 1], [], []>} : vector<8x64xbf16>, vector<64x128xbf16>, vector<8x128xf32> -> vector<8x128xf32>
    %c2_81 = arith.constant 2 : index
    %c0_82 = arith.constant 0 : index
    %433 = vector.load %arg9[%c2_81, %c0_82] : memref<5x128xf32, #tpu.memory_space<vmem>>, vector<1x128xf32>
    %434 = vector.broadcast %433 : vector<1x128xf32> to vector<8x128xf32>
    %435 = arith.addf %432, %434 : vector<8x128xf32>
    %cst_83 = arith.constant 0.000000e+00 : f32
    %436 = vector.broadcast %cst_83 : f32 to vector<8x128xf32>
    %437 = arith.maximumf %435, %436 : vector<8x128xf32>
    %438 = vector.extract_strided_slice %437 {offsets = [0, 0], sizes = [8, 32], strides = [1, 1]} : vector<8x128xf32> to vector<8x32xf32>
    %c3_84 = arith.constant 3 : index
    %c0_85 = arith.constant 0 : index
    %c0_86 = arith.constant 0 : index
    %439 = vector.load %arg8[%c3_84, %c0_85, %c0_86] : memref<5x128x128xbf16, #tpu.memory_space<vmem>>, vector<1x32x128xbf16>
    %440 = vector.shape_cast %439 : vector<1x32x128xbf16> to vector<32x128xbf16>
    %441 = arith.truncf %438 : vector<8x32xf32> to vector<8x32xbf16>
    %cst_87 = arith.constant dense<0.000000e+00> : vector<8x128xf32>
    %442 = tpu.matmul %441, %440, %cst_87 {dimension_numbers = #tpu.dot_dimension_numbers<[1], [0], [0], [1], [0, 0, 1, 1], [], []>} : vector<8x32xbf16>, vector<32x128xbf16>, vector<8x128xf32> -> vector<8x128xf32>
    %c3_88 = arith.constant 3 : index
    %c0_89 = arith.constant 0 : index
    %443 = vector.load %arg9[%c3_88, %c0_89] : memref<5x128xf32, #tpu.memory_space<vmem>>, vector<1x128xf32>
    %444 = vector.broadcast %443 : vector<1x128xf32> to vector<8x128xf32>
    %445 = arith.addf %442, %444 : vector<8x128xf32>
    %cst_90 = arith.constant 0.000000e+00 : f32
    %446 = vector.broadcast %cst_90 : f32 to vector<8x128xf32>
    %447 = arith.maximumf %445, %446 : vector<8x128xf32>
    %448 = vector.extract_strided_slice %447 {offsets = [0, 0], sizes = [8, 32], strides = [1, 1]} : vector<8x128xf32> to vector<8x32xf32>
    %c4_91 = arith.constant 4 : index
    %c0_92 = arith.constant 0 : index
    %c0_93 = arith.constant 0 : index
    %449 = vector.load %arg8[%c4_91, %c0_92, %c0_93] : memref<5x128x128xbf16, #tpu.memory_space<vmem>>, vector<1x32x128xbf16>
    %450 = vector.shape_cast %449 : vector<1x32x128xbf16> to vector<32x128xbf16>
    %451 = arith.truncf %448 : vector<8x32xf32> to vector<8x32xbf16>
    %cst_94 = arith.constant dense<0.000000e+00> : vector<8x128xf32>
    %452 = tpu.matmul %451, %450, %cst_94 {dimension_numbers = #tpu.dot_dimension_numbers<[1], [0], [0], [1], [0, 0, 1, 1], [], []>} : vector<8x32xbf16>, vector<32x128xbf16>, vector<8x128xf32> -> vector<8x128xf32>
    %c4_95 = arith.constant 4 : index
    %c0_96 = arith.constant 0 : index
    %453 = vector.load %arg9[%c4_95, %c0_96] : memref<5x128xf32, #tpu.memory_space<vmem>>, vector<1x128xf32>
    %454 = vector.broadcast %453 : vector<1x128xf32> to vector<8x128xf32>
    %455 = arith.addf %452, %454 : vector<8x128xf32>
    %c0_97 = arith.constant 0 : index
    %c0_98 = arith.constant 0 : index
    %456 = vector.load %arg10[%c0_97, %c0_98] : memref<8x128xf32, #tpu.memory_space<vmem>>, vector<8x128xf32>
    tpu.vector_store %arg10[%c0_97, %c0_98], %455 {strides = array<i32>} : memref<8x128xf32, #tpu.memory_space<vmem>>, vector<8x128xf32>,
    return
  }
  func.func @transform_0(%arg0: i32) -> (i32, i32) {
    %c0_i32 = arith.constant 0 : i32
    %c0_i32_0 = arith.constant 0 : i32
    return %arg0, %c0_i32 : i32, i32
  }
  func.func @transform_1(%arg0: i32) -> (i32, i32) {
    %c0_i32 = arith.constant 0 : i32
    %c0_i32_0 = arith.constant 0 : i32
    %c0_i32_1 = arith.constant 0 : i32
    return %c0_i32, %c0_i32_0 : i32, i32
  }
  func.func @transform_2(%arg0: i32) -> (i32, i32) {
    %c0_i32 = arith.constant 0 : i32
    %c0_i32_0 = arith.constant 0 : i32
    %c0_i32_1 = arith.constant 0 : i32
    return %c0_i32, %c0_i32_0 : i32, i32
  }
  func.func @transform_3(%arg0: i32) -> (i32, i32) {
    %c0_i32 = arith.constant 0 : i32
    %c0_i32_0 = arith.constant 0 : i32
    %c0_i32_1 = arith.constant 0 : i32
    return %c0_i32, %c0_i32_0 : i32, i32
  }
  func.func @transform_4(%arg0: i32) -> (i32, i32) {
    %c0_i32 = arith.constant 0 : i32
    %c0_i32_0 = arith.constant 0 : i32
    %c0_i32_1 = arith.constant 0 : i32
    return %c0_i32, %c0_i32_0 : i32, i32
  }
  func.func @transform_5(%arg0: i32) -> (i32, i32) {
    %c0_i32 = arith.constant 0 : i32
    %c0_i32_0 = arith.constant 0 : i32
    %c0_i32_1 = arith.constant 0 : i32
    return %c0_i32, %c0_i32_0 : i32, i32
  }
  func.func @transform_6(%arg0: i32) -> (i32, i32) {
    %c0_i32 = arith.constant 0 : i32
    %c0_i32_0 = arith.constant 0 : i32
    %c0_i32_1 = arith.constant 0 : i32
    return %c0_i32, %c0_i32_0 : i32, i32
  }
  func.func @transform_7(%arg0: i32) -> (i32, i32, i32) {
    %c0_i32 = arith.constant 0 : i32
    %c0_i32_0 = arith.constant 0 : i32
    %c0_i32_1 = arith.constant 0 : i32
    %c0_i32_2 = arith.constant 0 : i32
    return %c0_i32, %c0_i32_0, %c0_i32_1 : i32, i32, i32
  }
  func.func @transform_8(%arg0: i32) -> (i32, i32) {
    %c0_i32 = arith.constant 0 : i32
    %c0_i32_0 = arith.constant 0 : i32
    %c0_i32_1 = arith.constant 0 : i32
    return %c0_i32, %c0_i32_0 : i32, i32
  }
  func.func @transform_9(%arg0: i32) -> (i32, i32) {
    %c0_i32 = arith.constant 0 : i32
    %c0_i32_0 = arith.constant 0 : i32
    return %arg0, %c0_i32 : i32, i32
  }
}

</mosaic_0001>

<llo_original>
// kernel: nfm_lstm_forward.1
$region0: #{nfm_lstm_forward.1}
  #allocation0 [shape = 'u32[]', space=smem, size = 0x4, offset = 0x4, fixed_abs, tag = 'smem constant byte address 0x4 - core index']
  #allocation1 [shape = 'u32[144,128]{1,0:T(1,128)}', space=vmem, size = 0x12000, scoped, tag = 'internal scratch']
  %s0 = inlined_call_operand.vmem [shape: f32[8,128], index: 0, kind: input, shape index: {}]
  %s1 = inlined_call_operand.vmem [shape: f32[32,128], index: 1, kind: input, shape index: {}]
  %s2 = inlined_call_operand.vmem [shape: f32[16,32], index: 2, kind: input, shape index: {}]
  %s3 = inlined_call_operand.vmem [shape: f32[8,128], index: 3, kind: input, shape index: {}]
  %s4 = inlined_call_operand.vmem [shape: f32[8,256], index: 4, kind: input, shape index: {}]
  %s5 = inlined_call_operand.vmem [shape: bf16[64,256], index: 5, kind: input, shape index: {}]
  %s6 = inlined_call_operand.vmem [shape: bf16[32,128], index: 6, kind: input, shape index: {}]
  %s7 = inlined_call_operand.vmem [shape: bf16[5,128,128], index: 7, kind: input, shape index: {}]
  %s8 = inlined_call_operand.vmem [shape: f32[5,128], index: 8, kind: input, shape index: {}]
  %s9 = inlined_call_operand.vmem [shape: f32[8,128], index: 9, kind: output, shape index: {}]
  %s10 = sld [smem:[#allocation0]]
  $region46: #{nfm_lstm_forward.1} parent=0
    _
  %s12 = ssub.s32 1, %s10
  %s13 = scalar_select 0, %s12, %s10
  // Predicated region
  $region2: #{nfm_lstm_forward.1} parent=0 // pred_check
    _
  $region3: #{nfm_lstm_forward.1} parent=0 // pred_check_branch
    %15 = sbr.rel (0) target = $region5
  $region4: #{nfm_lstm_forward.1} parent=0 // pred_region
    _
  $region5: #{nfm_lstm_forward.1} parent=0 // pred_fallthru
    _
  // Predicated region
  $region6: #{nfm_lstm_forward.1} parent=0 // pred_check
    _
  $region7: #{nfm_lstm_forward.1} parent=0 // pred_check_branch
    %17 = sbr.rel (0) target = $region9
  $region8: #{nfm_lstm_forward.1} parent=0 // pred_region
    _
  $region9: #{nfm_lstm_forward.1} parent=0 // pred_fallthru
    _
  // Predicated region
  $region10: #{nfm_lstm_forward.1} parent=0 // pred_check
    _
  $region11: #{nfm_lstm_forward.1} parent=0 // pred_check_branch
    %19 = sbr.rel (0) target = $region13
  $region12: #{nfm_lstm_forward.1} parent=0 // pred_region
    _
  $region13: #{nfm_lstm_forward.1} parent=0 // pred_fallthru
    _
  // Predicated region
  $region14: #{nfm_lstm_forward.1} parent=0 // pred_check
    _
  $region15: #{nfm_lstm_forward.1} parent=0 // pred_check_branch
    %21 = sbr.rel (0) target = $region17
  $region16: #{nfm_lstm_forward.1} parent=0 // pred_region
    _
  $region17: #{nfm_lstm_forward.1} parent=0 // pred_fallthru
    _
  // Predicated region
  $region18: #{nfm_lstm_forward.1} parent=0 // pred_check
    _
  $region19: #{nfm_lstm_forward.1} parent=0 // pred_check_branch
    %23 = sbr.rel (0) target = $region21
  $region20: #{nfm_lstm_forward.1} parent=0 // pred_region
    _
  $region21: #{nfm_lstm_forward.1} parent=0 // pred_fallthru
    _
  // Predicated region
  $region22: #{nfm_lstm_forward.1} parent=0 // pred_check
    _
  $region23: #{nfm_lstm_forward.1} parent=0 // pred_check_branch
    %25 = sbr.rel (0) target = $region25
  $region24: #{nfm_lstm_forward.1} parent=0 // pred_region
    _
  $region25: #{nfm_lstm_forward.1} parent=0 // pred_fallthru
    _
  // Predicated region
  $region26: #{nfm_lstm_forward.1} parent=0 // pred_check
    _
  $region27: #{nfm_lstm_forward.1} parent=0 // pred_check_branch
    %27 = sbr.rel (0) target = $region29
  $region28: #{nfm_lstm_forward.1} parent=0 // pred_region
    _
  $region29: #{nfm_lstm_forward.1} parent=0 // pred_fallthru
    _
  // Predicated region
  $region30: #{nfm_lstm_forward.1} parent=0 // pred_check
    _
  $region31: #{nfm_lstm_forward.1} parent=0 // pred_check_branch
    %29 = sbr.rel (0) target = $region33
  $region32: #{nfm_lstm_forward.1} parent=0 // pred_region
    _
  $region33: #{nfm_lstm_forward.1} parent=0 // pred_fallthru
    _
  // Predicated region
  $region34: #{nfm_lstm_forward.1} parent=0 // pred_check
    _
  $region35: #{nfm_lstm_forward.1} parent=0 // pred_check_branch
    %31 = sbr.rel (0) target = $region37
  $region36: #{nfm_lstm_forward.1} parent=0 // pred_region
    _
  $region37: #{nfm_lstm_forward.1} parent=0 // pred_fallthru
    _
  %v33 = vld [vmem:[%s0] sm:$0xff]
  %v34 = vld [vmem:[%s2] sm:$0x1]
  %v35 = vld [vmem:[%s2 + $0x1] sm:$0x1]
  %v36 = vld [vmem:[%s2 + $0x2] sm:$0x1]
  %v37 = vld [vmem:[%s2 + $0x3] sm:$0x1]
  %v38 = vld [vmem:[%s2 + $0x4] sm:$0x1]
  %v39 = vld [vmem:[%s2 + $0x5] sm:$0x1]
  %v40 = vld [vmem:[%s2 + $0x6] sm:$0x1]
  %v41 = vld [vmem:[%s2 + $0x7] sm:$0x1]
  %v42 = vld [vmem:[%s2 + $0x8] sm:$0x1]
  %v43 = vld [vmem:[%s2 + $0x9] sm:$0x1]
  %v44 = vld [vmem:[%s2 + $0xa] sm:$0x1]
  %v45 = vlaneseq
  %v46 = vand.u32 %v45, 127
  %v47 = vcvt.f32.s32.to.zero.pseudo %v33
  %vm48 = vcmp.ge.s32.totalorder %v47, 0
  %vm49 = vcmp.le.s32.totalorder %v47, 10
  %vm50 = vmand %vm48, %vm49
  %v51 = vsel %vm50, 1, 0
  %v52 = vcvt.s32.f32 %v51
  %54 = vrot.lane.b32.xlu0 %v52, 3
  %v55 = vpop.permute.xlu0 %54
  %v57 = vmul.f32 %v33, %v55
  %58 = vset.pattern.permute.xlu0 0
  %59 = vperm.xlu0 %58, %v47
  %v60 = vpop.permute.xlu0 %59
  %vm61 = vcmp.eq.s32.totalorder %v46, %v60
  %v62 = vsel %vm61, 1, 0
  %v63 = vcvt.s32.f32 %v62
  %65 = vset.pattern.permute.xlu0 3
  %66 = vperm.xlu0 %65, %v57
  %v67 = vpop.permute.xlu0 %66
  %v69 = vmul.f32 %v63, %v67
  %v70 = vadd.f32 %v69, 0.0
  %vm71 = vcmp.le.s32.totalorder %v47, 2
  %vm72 = vmand %vm48, %vm71
  %v73 = vsel %vm72, 1, 0
  %v74 = vcvt.s32.f32 %v73
  %76 = vrot.lane.b32.xlu0 %v74, 3
  %v77 = vpop.permute.xlu0 %76
  %v79 = vmul.f32 %v33, %v77
  %v80 = vadd.s32 %v47, 11
  %81 = vset.pattern.permute.xlu0 1
  %82 = vperm.xlu0 %81, %v80
  %v83 = vpop.permute.xlu0 %82
  %vm84 = vcmp.eq.s32.totalorder %v46, %v83
  %v85 = vsel %vm84, 1, 0
  %v86 = vcvt.s32.f32 %v85
  %88 = vset.pattern.permute.xlu0 4
  %89 = vperm.xlu0 %88, %v79
  %v90 = vpop.permute.xlu0 %89
  %v92 = vmul.f32 %v86, %v90
  %v93 = vadd.f32 %v70, %v92
  %vm94 = vcmp.le.s32.totalorder %v47, 12
  %vm95 = vmand %vm48, %vm94
  %v96 = vsel %vm95, 1, 0
  %v97 = vcvt.s32.f32 %v96
  %99 = vrot.lane.b32.xlu0 %v97, 3
  %v100 = vpop.permute.xlu0 %99
  %v102 = vmul.f32 %v33, %v100
  %v103 = vadd.s32 %v47, 14
  %104 = vset.pattern.permute.xlu0 2
  %105 = vperm.xlu0 %104, %v103
  %v106 = vpop.permute.xlu0 %105
  %vm107 = vcmp.eq.s32.totalorder %v46, %v106
  %v108 = vsel %vm107, 1, 0
  %v109 = vcvt.s32.f32 %v108
  %111 = vset.pattern.permute.xlu0 5
  %112 = vperm.xlu0 %111, %v102
  %v113 = vpop.permute.xlu0 %112
  %v115 = vmul.f32 %v109, %v113
  %v116 = vadd.f32 %v93, %v115
  %v117 = vld [vmem:[%s1] sm:$0xff]
  %v118 = vld [vmem:[%s1 + $0x8] sm:$0xff]
  %v119 = vld [vmem:[%s1 + $0x10] sm:$0xff]
  %v120 = vld [vmem:[%s1 + $0x18] sm:$0xff]
  %vm121 = vcmask 261120
  %v123 = vsel %vm121, %v116, 0
  %125 = vmatprep.subr.mxu0 0.0
  %126 = vmatpush1.msra.mxu0 %v117
  %127 = vmatprep.subr.mxu0 0.0
  %128 = vmatpush1.msra.mxu0 %v118
  %129 = vmatprep.subr.mxu0 0.0
  %130 = vmatpush1.msra.mxu0 %v119
  %131 = vmatprep.subr.mxu0 0.0
  %132 = vmatpush1.msra.mxu0 %v120
  %133 = vmatprep.subr.mxu0 0.0
  %134 = vmatpush1.msra.mxu0 0.0
  %135 = vmatprep.subr.mxu0 0.0
  %136 = vmatpush1.msra.mxu0 0.0
  %137 = vmatprep.subr.mxu0 0.0
  %138 = vmatpush1.msra.mxu0 0.0
  %139 = vmatprep.subr.mxu0 0.0
  %140 = vmatpush1.msra.mxu0 0.0
  %141 = vmatprep.subr.mxu0 0.0
  %142 = vmatpush1.msra.mxu0 0.0
  %143 = vmatprep.subr.mxu0 0.0
  %144 = vmatpush1.msra.mxu0 0.0
  %145 = vmatprep.subr.mxu0 0.0
  %146 = vmatpush1.msra.mxu0 0.0
  %147 = vmatprep.subr.mxu0 0.0
  %148 = vmatpush1.msra.mxu0 0.0
  %149 = vmatprep.subr.mxu0 0.0
  %150 = vmatpush1.msra.mxu0 0.0
  %151 = vmatprep.subr.mxu0 0.0
  %152 = vmatpush1.msra.mxu0 0.0
  %153 = vmatprep.subr.mxu0 0.0
  %154 = vmatpush1.msra.mxu0 0.0
  %155 = vmatprep.subr.mxu0 0.0
  %156 = vmatpush1.msra.mxu0 0.0
  %157 = vmatprep.subr.mxu0 0.0
  %158 = vmatpush1.msra.mxu0 0.0
  %159 = vmatprep.subr.mxu0 0.0
  %160 = vmatpush1.msra.mxu0 0.0
  %161 = vmatprep.subr.mxu0 0.0
  %162 = vmatpush1.msra.mxu0 0.0
  %163 = vmatprep.subr.mxu0 0.0
  %164 = vmatpush1.msra.mxu0 0.0
  %165 = vmatprep.subr.mxu0 0.0
  %166 = vmatpush1.msra.mxu0 0.0
  %167 = vmatprep.subr.mxu0 0.0
  %168 = vmatpush1.msra.mxu0 0.0
  %169 = vmatprep.subr.mxu0 0.0
  %170 = vmatpush1.msra.mxu0 0.0
  %171 = vmatprep.subr.mxu0 0.0
  %172 = vmatpush1.msra.mxu0 0.0
  %173 = vmatprep.subr.mxu0 0.0
  %174 = vmatpush1.msra.mxu0 0.0
  %175 = vmatprep.subr.mxu0 0.0
  %176 = vmatpush1.msra.mxu0 0.0
  %177 = vmatprep.subr.mxu0 0.0
  %178 = vmatpush1.msra.mxu0 0.0
  %179 = vmatprep.subr.mxu0 0.0
  %180 = vmatpush1.msra.mxu0 0.0
  %181 = vmatprep.subr.mxu0 0.0
  %182 = vmatpush1.msra.mxu0 0.0
  %183 = vmatprep.subr.mxu0 0.0
  %184 = vmatpush1.msra.mxu0 0.0
  %185 = vmatprep.subr.mxu0 0.0
  %186 = vmatpush1.msra.mxu0 0.0
  %187 = vmatprep.subr.mxu0 0.0
  %188 = vmatpush1.msra.mxu0 0.0
  %189 = vmatprep.mubr.f32.mxu0 0.0
  %190 = vmatmul.mubr.f32.gmra.mrb[0].mxu0 %v123
  %v191 = vpop.f32.mrb[0].mxu0
  %v192 = vadd.f32 0.0, %v191
  %v193 = vpop.f32.mrb[0].mxu0
  %194 = vdwg.mxu0
  %v195 = vadd.f32 %v192, 0.0
  %v196 = vmul.f32 %v192, %v192
  %v197 = vadd.f32 %v196, 0.0
  %199 = vrot.lane.b32.xlu0 %v192, 96
  %v200 = vpop.permute.xlu0 %199
  %v202 = vadd.f32 %v195, %v200
  %204 = vrot.lane.b32.xlu0 %v196, 96
  %v205 = vpop.permute.xlu0 %204
  %v207 = vadd.f32 %v197, %v205
  %208 = vrot.lane.b32.xlu0 %v192, 64
  %v209 = vpop.permute.xlu0 %208
  %v211 = vadd.f32 %v202, %v209
  %212 = vrot.lane.b32.xlu0 %v196, 64
  %v213 = vpop.permute.xlu0 %212
  %v215 = vadd.f32 %v207, %v213
  %217 = vset.pattern.permute.xlu0 6
  %218 = vperm.xlu0 %217, %v33
  %v219 = vpop.permute.xlu0 %218
  %v221 = vlaneseq
  %v222 = vshrl.u32 %v221, 7
  %v223 = vsub.s32 0, %v222
  %v224 = vrot.slane %v34, %v223
  %v225 = vmul.f32 %v219, %v224
  %v226 = vlaneseq
  %v227 = vshrl.u32 %v226, 7
  %v228 = vsub.s32 0, %v227
  %v229 = vrot.slane %v35, %v228
  %v230 = vadd.f32 %v225, %v229
  %231 = vset.pattern.permute.xlu0 7
  %232 = vperm.xlu0 %231, %v33
  %v233 = vpop.permute.xlu0 %232
  %v235 = vmul.f32 %v230, %v233
  %v236 = vadd.f32 %v211, %v235
  %v237 = vmul.f32 %v235, %v235
  %v238 = vadd.f32 %v215, %v237
  %239 = vrot.lane.b32.xlu0 %v33, 121
  %v240 = vpop.permute.xlu0 %239
  %v242 = vmul.f32 %v33, %v240
  %244 = vrot.lane.b32.xlu0 %v242, 120
  %v245 = vpop.permute.xlu0 %244
  %vm247 = vcmask 56320
  %v248 = vsel %vm247, %v245, 0.0
  %249 = vadd.xlane.f32.xlu0 %v248
  %v250 = vpop.xlane.xlu0 %249
  %251 = vrot.lane.b32.xlu0 %v33, 113
  %v252 = vpop.permute.xlu0 %251
  %v254 = vsel %vm247, %v252, 0.0
  %255 = vadd.xlane.f32.xlu0 %v254
  %v256 = vpop.xlane.xlu0 %255
  %v257 = vmul.f32 %v242, %v242
  %259 = vrot.lane.b32.xlu0 %v257, 120
  %v260 = vpop.permute.xlu0 %259
  %v262 = vsel %vm247, %v260, 0.0
  %263 = vadd.xlane.f32.xlu0 %v262
  %v264 = vpop.xlane.xlu0 %263
  %v265 = vmul.f32 %v242, %v240
  %267 = vrot.lane.b32.xlu0 %v265, 120
  %v268 = vpop.permute.xlu0 %267
  %v270 = vsel %vm247, %v268, 0.0
  %271 = vadd.xlane.f32.xlu0 %v270
  %v272 = vpop.xlane.xlu0 %271
  %v273 = vmul.f32 %v33, %v33
  %275 = vrot.lane.b32.xlu0 %v273, 113
  %v276 = vpop.permute.xlu0 %275
  %v278 = vsel %vm247, %v276, 0.0
  %279 = vadd.xlane.f32.xlu0 %v278
  %v280 = vpop.xlane.xlu0 %279
  %v281 = vlaneseq
  %v282 = vshrl.u32 %v281, 7
  %v283 = vsub.s32 0, %v282
  %v284 = vrot.slane %v36, %v283
  %v285 = vmul.f32 %v250, %v284
  %v286 = vadd.f32 %v236, %v285
  %v287 = vlaneseq
  %v288 = vshrl.u32 %v287, 7
  %v289 = vsub.s32 0, %v288
  %v290 = vrot.slane %v37, %v289
  %v291 = vmul.f32 %v256, %v290
  %v292 = vadd.f32 %v286, %v291
  %v293 = vlaneseq
  %v294 = vshrl.u32 %v293, 7
  %v295 = vsub.s32 0, %v294
  %v296 = vrot.slane %v38, %v295
  %v297 = vmul.f32 %v264, %v296
  %v298 = vadd.f32 %v238, %v297
  %v299 = vmul.f32 %v272, 2.0
  %v300 = vlaneseq
  %v301 = vshrl.u32 %v300, 7
  %v302 = vsub.s32 0, %v301
  %v303 = vrot.slane %v39, %v302
  %v304 = vmul.f32 %v299, %v303
  %v305 = vadd.f32 %v298, %v304
  %v306 = vlaneseq
  %v307 = vshrl.u32 %v306, 7
  %v308 = vsub.s32 0, %v307
  %v309 = vrot.slane %v40, %v308
  %v310 = vmul.f32 %v280, %v309
  %v311 = vadd.f32 %v305, %v310
  %v312 = vld [vmem:[%s4] ss:$8 sm:$0x3]
  %s313 = scalar_lea.vmem %s4, 1
  %v314 = vld [vmem:[%s313] ss:$8 sm:$0x3]
  %s315 = scalar_lea.vmem %s4, 2
  %v316 = vld [vmem:[%s315] ss:$8 sm:$0x3]
  %s317 = scalar_lea.vmem %s4, 3
  %v318 = vld [vmem:[%s317] ss:$8 sm:$0x3]
  %s319 = scalar_lea.vmem %s4, 4
  %v320 = vld [vmem:[%s319] ss:$8 sm:$0x3]
  %321 = vset.pattern.permute.xlu0 22
  %322 = vperm.xlu0 %321, %v33
  %v323 = vpop.permute.xlu0 %322
  %v326 = vlaneseq
  %v327 = vshrl.u32 %v326, 7
  %v328 = vsub.s32 0, %v327
  %v329 = vrot.slane %v312, %v328
  %v330 = vlaneseq
  %v331 = vshrl.u32 %v330, 7
  %v332 = vsub.s32 1, %v331
  %v333 = vrot.slane %v312, %v332
  %v336 = vmul.f32 %v323, %v329
  %v337 = vmul.f32 %v323, %v333
  %v339 = vlaneseq
  %v340 = vshrl.u32 %v339, 7
  %v341 = vsub.s32 0, %v340
  %v342 = vrot.slane %v314, %v341
  %v343 = vlaneseq
  %v344 = vshrl.u32 %v343, 7
  %v345 = vsub.s32 1, %v344
  %v346 = vrot.slane %v314, %v345
  %v349 = vadd.f32 %v336, %v342
  %v350 = vadd.f32 %v337, %v346
  %351 = vset.pattern.permute.xlu0 28
  %352 = vperm.xlu0 %351, %v33
  %v353 = vpop.permute.xlu0 %352
  %v355 = vmul.f32 %v353, %v349
  %v356 = vmul.f32 %v353, %v350
  %357 = vset.pattern.permute.xlu0 34
  %358 = vperm.xlu0 %357, %v33
  %v359 = vpop.permute.xlu0 %358
  %v362 = vlaneseq
  %v363 = vshrl.u32 %v362, 7
  %v364 = vsub.s32 0, %v363
  %v365 = vrot.slane %v316, %v364
  %v366 = vlaneseq
  %v367 = vshrl.u32 %v366, 7
  %v368 = vsub.s32 1, %v367
  %v369 = vrot.slane %v316, %v368
  %v372 = vmul.f32 %v359, %v365
  %v373 = vmul.f32 %v359, %v369
  %v375 = vlaneseq
  %v376 = vshrl.u32 %v375, 7
  %v377 = vsub.s32 0, %v376
  %v378 = vrot.slane %v318, %v377
  %v379 = vlaneseq
  %v380 = vshrl.u32 %v379, 7
  %v381 = vsub.s32 1, %v380
  %v382 = vrot.slane %v318, %v381
  %v385 = vadd.f32 %v372, %v378
  %v386 = vadd.f32 %v373, %v382
  %387 = vset.pattern.permute.xlu0 39
  %388 = vperm.xlu0 %387, %v33
  %v389 = vpop.permute.xlu0 %388
  %v391 = vmul.f32 %v389, %v385
  %v392 = vmul.f32 %v389, %v386
  %v393 = vadd.f32 %v355, %v391
  %v394 = vadd.f32 %v356, %v392
  %395 = vset.pattern.permute.xlu0 23
  %396 = vperm.xlu0 %395, %v33
  %v397 = vpop.permute.xlu0 %396
  %v399 = vmul.f32 %v397, %v329
  %v400 = vmul.f32 %v397, %v333
  %v401 = vadd.f32 %v399, %v342
  %v402 = vadd.f32 %v400, %v346
  %403 = vset.pattern.permute.xlu0 29
  %404 = vperm.xlu0 %403, %v33
  %v405 = vpop.permute.xlu0 %404
  %v407 = vmul.f32 %v405, %v401
  %v408 = vmul.f32 %v405, %v402
  %409 = vset.pattern.permute.xlu0 35
  %410 = vperm.xlu0 %409, %v33
  %v411 = vpop.permute.xlu0 %410
  %v413 = vmul.f32 %v411, %v365
  %v414 = vmul.f32 %v411, %v369
  %v415 = vadd.f32 %v413, %v378
  %v416 = vadd.f32 %v414, %v382
  %417 = vset.pattern.permute.xlu0 40
  %418 = vperm.xlu0 %417, %v33
  %v419 = vpop.permute.xlu0 %418
  %v421 = vmul.f32 %v419, %v415
  %v422 = vmul.f32 %v419, %v416
  %v423 = vadd.f32 %v407, %v421
  %v424 = vadd.f32 %v408, %v422
  %425 = vset.pattern.permute.xlu0 24
  %426 = vperm.xlu0 %425, %v33
  %v427 = vpop.permute.xlu0 %426
  %v429 = vmul.f32 %v427, %v329
  %v430 = vmul.f32 %v427, %v333
  %v431 = vadd.f32 %v429, %v342
  %v432 = vadd.f32 %v430, %v346
  %433 = vset.pattern.permute.xlu0 30
  %434 = vperm.xlu0 %433, %v33
  %v435 = vpop.permute.xlu0 %434
  %v437 = vmul.f32 %v435, %v431
  %v438 = vmul.f32 %v435, %v432
  %439 = vset.pattern.permute.xlu0 36
  %440 = vperm.xlu0 %439, %v33
  %v441 = vpop.permute.xlu0 %440
  %v443 = vmul.f32 %v441, %v365
  %v444 = vmul.f32 %v441, %v369
  %v445 = vadd.f32 %v443, %v378
  %v446 = vadd.f32 %v444, %v382
  %447 = vset.pattern.permute.xlu0 41
  %448 = vperm.xlu0 %447, %v33
  %v449 = vpop.permute.xlu0 %448
  %v451 = vmul.f32 %v449, %v445
  %v452 = vmul.f32 %v449, %v446
  %v453 = vadd.f32 %v437, %v451
  %v454 = vadd.f32 %v438, %v452
  %455 = vset.pattern.permute.xlu0 25
  %456 = vperm.xlu0 %455, %v33
  %v457 = vpop.permute.xlu0 %456
  %v459 = vmul.f32 %v457, %v329
  %v460 = vmul.f32 %v457, %v333
  %v461 = vadd.f32 %v459, %v342
  %v462 = vadd.f32 %v460, %v346
  %463 = vset.pattern.permute.xlu0 31
  %464 = vperm.xlu0 %463, %v33
  %v465 = vpop.permute.xlu0 %464
  %v467 = vmul.f32 %v465, %v461
  %v468 = vmul.f32 %v465, %v462
  %469 = vset.pattern.permute.xlu0 37
  %470 = vperm.xlu0 %469, %v33
  %v471 = vpop.permute.xlu0 %470
  %v473 = vmul.f32 %v471, %v365
  %v474 = vmul.f32 %v471, %v369
  %v475 = vadd.f32 %v473, %v378
  %v476 = vadd.f32 %v474, %v382
  %477 = vset.pattern.permute.xlu0 42
  %478 = vperm.xlu0 %477, %v33
  %v479 = vpop.permute.xlu0 %478
  %v481 = vmul.f32 %v479, %v475
  %v482 = vmul.f32 %v479, %v476
  %v483 = vadd.f32 %v467, %v481
  %v484 = vadd.f32 %v468, %v482
  %485 = vset.pattern.permute.xlu0 26
  %486 = vperm.xlu0 %485, %v33
  %v487 = vpop.permute.xlu0 %486
  %v489 = vmul.f32 %v487, %v329
  %v490 = vmul.f32 %v487, %v333
  %v491 = vadd.f32 %v489, %v342
  %v492 = vadd.f32 %v490, %v346
  %493 = vset.pattern.permute.xlu0 32
  %494 = vperm.xlu0 %493, %v33
  %v495 = vpop.permute.xlu0 %494
  %v497 = vmul.f32 %v495, %v491
  %v498 = vmul.f32 %v495, %v492
  %499 = vset.pattern.permute.xlu0 38
  %500 = vperm.xlu0 %499, %v33
  %v501 = vpop.permute.xlu0 %500
  %v503 = vmul.f32 %v501, %v365
  %v504 = vmul.f32 %v501, %v369
  %v505 = vadd.f32 %v503, %v378
  %v506 = vadd.f32 %v504, %v382
  %507 = vset.pattern.permute.xlu0 43
  %508 = vperm.xlu0 %507, %v33
  %v509 = vpop.permute.xlu0 %508
  %v511 = vmul.f32 %v509, %v505
  %v512 = vmul.f32 %v509, %v506
  %v513 = vadd.f32 %v497, %v511
  %v514 = vadd.f32 %v498, %v512
  %v515 = vld [vmem:[%s3] sm:$0x1]
  %v516 = vld [vmem:[%s3 + $0x1] sm:$0x1]
  %v517 = vld [vmem:[%s3 + $0x2] sm:$0x1]
  %518 = vset.pattern.permute.xlu0 27
  %519 = vperm.xlu0 %518, %v33
  %v520 = vpop.permute.xlu0 %519
  %v522 = vlaneseq
  %v523 = vshrl.u32 %v522, 7
  %v524 = vsub.s32 0, %v523
  %v525 = vrot.slane %v515, %v524
  %v526 = vmul.f32 %v520, %v525
  %v527 = vlaneseq
  %v528 = vshrl.u32 %v527, 7
  %v529 = vsub.s32 0, %v528
  %v530 = vrot.slane %v516, %v529
  %v531 = vadd.f32 %v526, %v530
  %532 = vset.pattern.permute.xlu0 33
  %533 = vperm.xlu0 %532, %v33
  %v534 = vpop.permute.xlu0 %533
  %v536 = vmul.f32 %v534, %v531
  %v537 = vld [vmem:[%s5] sm:$0xff]
  %v538 = vld [vmem:[%s5 + $0x8] sm:$0xff]
  %v539 = vld [vmem:[%s5 + $0x10] sm:$0xff]
  %v540 = vld [vmem:[%s5 + $0x18] sm:$0xff]
  %v541 = vld [vmem:[%s5 + $0x20] sm:$0xff]
  %v542 = vld [vmem:[%s5 + $0x28] sm:$0xff]
  %v543 = vld [vmem:[%s5 + $0x30] sm:$0xff]
  %v544 = vld [vmem:[%s5 + $0x38] sm:$0xff]
  %v553 = vunpack.c.l.b16 %v537
  %v554 = vunpack.c.h.b16 %v537
  %v555 = vunpack.c.l.b16 %v538
  %v556 = vunpack.c.h.b16 %v538
  %v557 = vunpack.c.l.b16 %v539
  %v558 = vunpack.c.h.b16 %v539
  %v559 = vunpack.c.l.b16 %v540
  %v560 = vunpack.c.h.b16 %v540
  %v561 = vunpack.c.l.b16 %v541
  %v562 = vunpack.c.h.b16 %v541
  %v563 = vunpack.c.l.b16 %v542
  %v564 = vunpack.c.h.b16 %v542
  %v565 = vunpack.c.l.b16 %v543
  %v566 = vunpack.c.h.b16 %v543
  %v567 = vunpack.c.l.b16 %v544
  %v568 = vunpack.c.h.b16 %v544
  %v569 = vpack.c.b16 %v555, %v553
  %v570 = vpack.c.b16 %v556, %v554
  %v571 = vpack.c.b16 %v559, %v557
  %v572 = vpack.c.b16 %v560, %v558
  %v573 = vpack.c.b16 %v563, %v561
  %v574 = vpack.c.b16 %v564, %v562
  %v575 = vpack.c.b16 %v567, %v565
  %v576 = vpack.c.b16 %v568, %v566
  %vm585 = vcmask 523264
  %v587 = vsel %vm585, 0, 0
  %589 = vmatprep.subr.bf16.mxu0 %v570
  %590 = vmatpush1.bf16.msra.mxu0 %v569
  %591 = vmatprep.subr.bf16.mxu0 %v572
  %592 = vmatpush1.bf16.msra.mxu0 %v571
  %593 = vmatprep.subr.bf16.mxu0 %v574
  %594 = vmatpush1.bf16.msra.mxu0 %v573
  %595 = vmatprep.subr.bf16.mxu0 %v576
  %596 = vmatpush1.bf16.msra.mxu0 %v575
  %597 = vmatprep.subr.bf16.mxu0 0
  %598 = vmatpush1.bf16.msra.mxu0 0
  %599 = vmatprep.subr.bf16.mxu0 0
  %600 = vmatpush1.bf16.msra.mxu0 0
  %601 = vmatprep.subr.bf16.mxu0 0
  %602 = vmatpush1.bf16.msra.mxu0 0
  %603 = vmatprep.subr.bf16.mxu0 0
  %604 = vmatpush1.bf16.msra.mxu0 0
  %605 = vmatprep.subr.bf16.mxu0 0
  %606 = vmatpush1.bf16.msra.mxu0 0
  %607 = vmatprep.subr.bf16.mxu0 0
  %608 = vmatpush1.bf16.msra.mxu0 0
  %609 = vmatprep.subr.bf16.mxu0 0
  %610 = vmatpush1.bf16.msra.mxu0 0
  %611 = vmatprep.subr.bf16.mxu0 0
  %612 = vmatpush1.bf16.msra.mxu0 0
  %613 = vmatprep.subr.bf16.mxu0 0
  %614 = vmatpush1.bf16.msra.mxu0 0
  %615 = vmatprep.subr.bf16.mxu0 0
  %616 = vmatpush1.bf16.msra.mxu0 0
  %617 = vmatprep.subr.bf16.mxu0 0
  %618 = vmatpush1.bf16.msra.mxu0 0
  %619 = vmatprep.subr.bf16.mxu0 0
  %620 = vmatpush1.bf16.msra.mxu0 0
  %621 = vmatprep.mubr.bf16.mxu0 0
  %622 = vmatmul.mubr.bf16.gmra.mrb[0].mxu0 %v587
  %v623 = vpop.f32.mrb[0].mxu0
  %v624 = vadd.f32 0.0, %v623
  %v625 = vpop.f32.mrb[0].mxu0
  %v626 = vadd.f32 0.0, %v625
  %v627 = vpop.f32.mrb[0].mxu0
  %v628 = vpop.f32.mrb[0].mxu0
  %629 = vdwg.mxu0
  %v630 = vadd.f32 %v393, %v624
  %v631 = vadd.f32 %v394, %v626
  %v633 = vlaneseq
  %v634 = vshrl.u32 %v633, 7
  %v635 = vsub.s32 0, %v634
  %v636 = vrot.slane %v320, %v635
  %v637 = vlaneseq
  %v638 = vshrl.u32 %v637, 7
  %v639 = vsub.s32 1, %v638
  %v640 = vrot.slane %v320, %v639
  %v643 = vadd.f32 %v630, %v636
  %v644 = vadd.f32 %v631, %v640
  %v645 = vxor.u32 %v643, 2147483648
  %v646 = vxor.u32 %v644, 2147483648
  %v647 = vmul.f32 %v645, 1.442695
  %v648 = vpow.pop %v647
  %v649 = vmul.f32 %v646, 1.442695
  %v650 = vpow.pop %v649
  %v651 = vadd.f32 %v648, 1.0
  %v652 = vadd.f32 %v650, 1.0
  %v653 = vrcp.pop %v651
  %v654 = vmul.f32 1.0, %v653
  %v655 = vrcp.pop %v652
  %v656 = vmul.f32 1.0, %v655
  %v657 = vtanh.pop %v644
  %v658 = vmul.f32 %v654, 0.0
  %660 = vrot.lane.b32.xlu0 %v657, 64
  %v661 = vpop.permute.xlu0 %660
  %v663 = vmul.f32 %v654, %v661
  %665 = vrot.lane.b32.xlu0 %v663, 64
  %v666 = vpop.permute.xlu0 %665
  %v668 = vadd.f32 %v658, %v666
  %v669 = vtanh.pop %v668
  %671 = vrot.lane.b32.xlu0 %v669, 64
  %v672 = vpop.permute.xlu0 %671
  %v674 = vmul.f32 %v656, %v672
  %v675 = vpack.c.bf16 %v674, %v674
  %v677 = vsel %vm585, %v675, 0
  %679 = vmatprep.subr.bf16.mxu0 %v570
  %680 = vmatpush1.bf16.msra.mxu0 %v569
  %681 = vmatprep.subr.bf16.mxu0 %v572
  %682 = vmatpush1.bf16.msra.mxu0 %v571
  %683 = vmatprep.subr.bf16.mxu0 %v574
  %684 = vmatpush1.bf16.msra.mxu0 %v573
  %685 = vmatprep.subr.bf16.mxu0 %v576
  %686 = vmatpush1.bf16.msra.mxu0 %v575
  %687 = vmatprep.subr.bf16.mxu0 0
  %688 = vmatpush1.bf16.msra.mxu0 0
  %689 = vmatprep.subr.bf16.mxu0 0
  %690 = vmatpush1.bf16.msra.mxu0 0
  %691 = vmatprep.subr.bf16.mxu0 0
  %692 = vmatpush1.bf16.msra.mxu0 0
  %693 = vmatprep.subr.bf16.mxu0 0
  %694 = vmatpush1.bf16.msra.mxu0 0
  %695 = vmatprep.subr.bf16.mxu0 0
  %696 = vmatpush1.bf16.msra.mxu0 0
  %697 = vmatprep.subr.bf16.mxu0 0
  %698 = vmatpush1.bf16.msra.mxu0 0
  %699 = vmatprep.subr.bf16.mxu0 0
  %700 = vmatpush1.bf16.msra.mxu0 0
  %701 = vmatprep.subr.bf16.mxu0 0
  %702 = vmatpush1.bf16.msra.mxu0 0
  %703 = vmatprep.subr.bf16.mxu0 0
  %704 = vmatpush1.bf16.msra.mxu0 0
  %705 = vmatprep.subr.bf16.mxu0 0
  %706 = vmatpush1.bf16.msra.mxu0 0
  %707 = vmatprep.subr.bf16.mxu0 0
  %708 = vmatpush1.bf16.msra.mxu0 0
  %709 = vmatprep.subr.bf16.mxu0 0
  %710 = vmatpush1.bf16.msra.mxu0 0
  %711 = vmatprep.mubr.bf16.mxu0 0
  %712 = vmatmul.mubr.bf16.gmra.mrb[0].mxu0 %v677
  %v713 = vpop.f32.mrb[0].mxu0
  %v714 = vadd.f32 0.0, %v713
  %v715 = vpop.f32.mrb[0].mxu0
  %v716 = vadd.f32 0.0, %v715
  %v717 = vpop.f32.mrb[0].mxu0
  %v718 = vpop.f32.mrb[0].mxu0
  %719 = vdwg.mxu0
  %v720 = vadd.f32 %v423, %v714
  %v721 = vadd.f32 %v424, %v716
  %v722 = vadd.f32 %v720, %v636
  %v723 = vadd.f32 %v721, %v640
  %v724 = vxor.u32 %v722, 2147483648
  %v725 = vxor.u32 %v723, 2147483648
  %v726 = vmul.f32 %v724, 1.442695
  %v727 = vpow.pop %v726
  %v728 = vmul.f32 %v725, 1.442695
  %v729 = vpow.pop %v728
  %v730 = vadd.f32 %v727, 1.0
  %v731 = vadd.f32 %v729, 1.0
  %v732 = vrcp.pop %v730
  %v733 = vmul.f32 1.0, %v732
  %v734 = vrcp.pop %v731
  %v735 = vmul.f32 1.0, %v734
  %v736 = vtanh.pop %v723
  %v737 = vmul.f32 %v733, %v668
  %739 = vrot.lane.b32.xlu0 %v736, 64
  %v740 = vpop.permute.xlu0 %739
  %v742 = vmul.f32 %v733, %v740
  %744 = vrot.lane.b32.xlu0 %v742, 64
  %v745 = vpop.permute.xlu0 %744
  %v747 = vadd.f32 %v737, %v745
  %v748 = vtanh.pop %v747
  %750 = vrot.lane.b32.xlu0 %v748, 64
  %v751 = vpop.permute.xlu0 %750
  %v753 = vmul.f32 %v735, %v751
  %v754 = vpack.c.bf16 %v753, %v753
  %v756 = vsel %vm585, %v754, 0
  %758 = vmatprep.subr.bf16.mxu0 %v570
  %759 = vmatpush1.bf16.msra.mxu0 %v569
  %760 = vmatprep.subr.bf16.mxu0 %v572
  %761 = vmatpush1.bf16.msra.mxu0 %v571
  %762 = vmatprep.subr.bf16.mxu0 %v574
  %763 = vmatpush1.bf16.msra.mxu0 %v573
  %764 = vmatprep.subr.bf16.mxu0 %v576
  %765 = vmatpush1.bf16.msra.mxu0 %v575
  %766 = vmatprep.subr.bf16.mxu0 0
  %767 = vmatpush1.bf16.msra.mxu0 0
  %768 = vmatprep.subr.bf16.mxu0 0
  %769 = vmatpush1.bf16.msra.mxu0 0
  %770 = vmatprep.subr.bf16.mxu0 0
  %771 = vmatpush1.bf16.msra.mxu0 0
  %772 = vmatprep.subr.bf16.mxu0 0
  %773 = vmatpush1.bf16.msra.mxu0 0
  %774 = vmatprep.subr.bf16.mxu0 0
  %775 = vmatpush1.bf16.msra.mxu0 0
  %776 = vmatprep.subr.bf16.mxu0 0
  %777 = vmatpush1.bf16.msra.mxu0 0
  %778 = vmatprep.subr.bf16.mxu0 0
  %779 = vmatpush1.bf16.msra.mxu0 0
  %780 = vmatprep.subr.bf16.mxu0 0
  %781 = vmatpush1.bf16.msra.mxu0 0
  %782 = vmatprep.subr.bf16.mxu0 0
  %783 = vmatpush1.bf16.msra.mxu0 0
  %784 = vmatprep.subr.bf16.mxu0 0
  %785 = vmatpush1.bf16.msra.mxu0 0
  %786 = vmatprep.subr.bf16.mxu0 0
  %787 = vmatpush1.bf16.msra.mxu0 0
  %788 = vmatprep.subr.bf16.mxu0 0
  %789 = vmatpush1.bf16.msra.mxu0 0
  %790 = vmatprep.mubr.bf16.mxu0 0
  %791 = vmatmul.mubr.bf16.gmra.mrb[0].mxu0 %v756
  %v792 = vpop.f32.mrb[0].mxu0
  %v793 = vadd.f32 0.0, %v792
  %v794 = vpop.f32.mrb[0].mxu0
  %v795 = vadd.f32 0.0, %v794
  %v796 = vpop.f32.mrb[0].mxu0
  %v797 = vpop.f32.mrb[0].mxu0
  %798 = vdwg.mxu0
  %v799 = vadd.f32 %v453, %v793
  %v800 = vadd.f32 %v454, %v795
  %v801 = vadd.f32 %v799, %v636
  %v802 = vadd.f32 %v800, %v640
  %v803 = vxor.u32 %v801, 2147483648
  %v804 = vxor.u32 %v802, 2147483648
  %v805 = vmul.f32 %v803, 1.442695
  %v806 = vpow.pop %v805
  %v807 = vmul.f32 %v804, 1.442695
  %v808 = vpow.pop %v807
  %v809 = vadd.f32 %v806, 1.0
  %v810 = vadd.f32 %v808, 1.0
  %v811 = vrcp.pop %v809
  %v812 = vmul.f32 1.0, %v811
  %v813 = vrcp.pop %v810
  %v814 = vmul.f32 1.0, %v813
  %v815 = vtanh.pop %v802
  %v816 = vmul.f32 %v812, %v747
  %818 = vrot.lane.b32.xlu0 %v815, 64
  %v819 = vpop.permute.xlu0 %818
  %v821 = vmul.f32 %v812, %v819
  %823 = vrot.lane.b32.xlu0 %v821, 64
  %v824 = vpop.permute.xlu0 %823
  %v826 = vadd.f32 %v816, %v824
  %v827 = vtanh.pop %v826
  %829 = vrot.lane.b32.xlu0 %v827, 64
  %v830 = vpop.permute.xlu0 %829
  %v832 = vmul.f32 %v814, %v830
  %v833 = vpack.c.bf16 %v832, %v832
  %v835 = vsel %vm585, %v833, 0
  %837 = vmatprep.subr.bf16.mxu0 %v570
  %838 = vmatpush1.bf16.msra.mxu0 %v569
  %839 = vmatprep.subr.bf16.mxu0 %v572
  %840 = vmatpush1.bf16.msra.mxu0 %v571
  %841 = vmatprep.subr.bf16.mxu0 %v574
  %842 = vmatpush1.bf16.msra.mxu0 %v573
  %843 = vmatprep.subr.bf16.mxu0 %v576
  %844 = vmatpush1.bf16.msra.mxu0 %v575
  %845 = vmatprep.subr.bf16.mxu0 0
  %846 = vmatpush1.bf16.msra.mxu0 0
  %847 = vmatprep.subr.bf16.mxu0 0
  %848 = vmatpush1.bf16.msra.mxu0 0
  %849 = vmatprep.subr.bf16.mxu0 0
  %850 = vmatpush1.bf16.msra.mxu0 0
  %851 = vmatprep.subr.bf16.mxu0 0
  %852 = vmatpush1.bf16.msra.mxu0 0
  %853 = vmatprep.subr.bf16.mxu0 0
  %854 = vmatpush1.bf16.msra.mxu0 0
  %855 = vmatprep.subr.bf16.mxu0 0
  %856 = vmatpush1.bf16.msra.mxu0 0
  %857 = vmatprep.subr.bf16.mxu0 0
  %858 = vmatpush1.bf16.msra.mxu0 0
  %859 = vmatprep.subr.bf16.mxu0 0
  %860 = vmatpush1.bf16.msra.mxu0 0
  %861 = vmatprep.subr.bf16.mxu0 0
  %862 = vmatpush1.bf16.msra.mxu0 0
  %863 = vmatprep.subr.bf16.mxu0 0
  %864 = vmatpush1.bf16.msra.mxu0 0
  %865 = vmatprep.subr.bf16.mxu0 0
  %866 = vmatpush1.bf16.msra.mxu0 0
  %867 = vmatprep.subr.bf16.mxu0 0
  %868 = vmatpush1.bf16.msra.mxu0 0
  %869 = vmatprep.mubr.bf16.mxu0 0
  %870 = vmatmul.mubr.bf16.gmra.mrb[0].mxu0 %v835
  %v871 = vpop.f32.mrb[0].mxu0
  %v872 = vadd.f32 0.0, %v871
  %v873 = vpop.f32.mrb[0].mxu0
  %v874 = vadd.f32 0.0, %v873
  %v875 = vpop.f32.mrb[0].mxu0
  %v876 = vpop.f32.mrb[0].mxu0
  %877 = vdwg.mxu0
  %v878 = vadd.f32 %v483, %v872
  %v879 = vadd.f32 %v484, %v874
  %v880 = vadd.f32 %v878, %v636
  %v881 = vadd.f32 %v879, %v640
  %v882 = vxor.u32 %v880, 2147483648
  %v883 = vxor.u32 %v881, 2147483648
  %v884 = vmul.f32 %v882, 1.442695
  %v885 = vpow.pop %v884
  %v886 = vmul.f32 %v883, 1.442695
  %v887 = vpow.pop %v886
  %v888 = vadd.f32 %v885, 1.0
  %v889 = vadd.f32 %v887, 1.0
  %v890 = vrcp.pop %v888
  %v891 = vmul.f32 1.0, %v890
  %v892 = vrcp.pop %v889
  %v893 = vmul.f32 1.0, %v892
  %v894 = vtanh.pop %v881
  %v895 = vmul.f32 %v891, %v826
  %897 = vrot.lane.b32.xlu0 %v894, 64
  %v898 = vpop.permute.xlu0 %897
  %v900 = vmul.f32 %v891, %v898
  %902 = vrot.lane.b32.xlu0 %v900, 64
  %v903 = vpop.permute.xlu0 %902
  %v905 = vadd.f32 %v895, %v903
  %v906 = vtanh.pop %v905
  %908 = vrot.lane.b32.xlu0 %v906, 64
  %v909 = vpop.permute.xlu0 %908
  %v911 = vmul.f32 %v893, %v909
  %v912 = vpack.c.bf16 %v911, %v911
  %v914 = vsel %vm585, %v912, 0
  %916 = vmatprep.subr.bf16.mxu0 %v570
  %917 = vmatpush1.bf16.msra.mxu0 %v569
  %918 = vmatprep.subr.bf16.mxu0 %v572
  %919 = vmatpush1.bf16.msra.mxu0 %v571
  %920 = vmatprep.subr.bf16.mxu0 %v574
  %921 = vmatpush1.bf16.msra.mxu0 %v573
  %922 = vmatprep.subr.bf16.mxu0 %v576
  %923 = vmatpush1.bf16.msra.mxu0 %v575
  %924 = vmatprep.subr.bf16.mxu0 0
  %925 = vmatpush1.bf16.msra.mxu0 0
  %926 = vmatprep.subr.bf16.mxu0 0
  %927 = vmatpush1.bf16.msra.mxu0 0
  %928 = vmatprep.subr.bf16.mxu0 0
  %929 = vmatpush1.bf16.msra.mxu0 0
  %930 = vmatprep.subr.bf16.mxu0 0
  %931 = vmatpush1.bf16.msra.mxu0 0
  %932 = vmatprep.subr.bf16.mxu0 0
  %933 = vmatpush1.bf16.msra.mxu0 0
  %934 = vmatprep.subr.bf16.mxu0 0
  %935 = vmatpush1.bf16.msra.mxu0 0
  %936 = vmatprep.subr.bf16.mxu0 0
  %937 = vmatpush1.bf16.msra.mxu0 0
  %938 = vmatprep.subr.bf16.mxu0 0
  %939 = vmatpush1.bf16.msra.mxu0 0
  %940 = vmatprep.subr.bf16.mxu0 0
  %941 = vmatpush1.bf16.msra.mxu0 0
  %942 = vmatprep.subr.bf16.mxu0 0
  %943 = vmatpush1.bf16.msra.mxu0 0
  %944 = vmatprep.subr.bf16.mxu0 0
  %945 = vmatpush1.bf16.msra.mxu0 0
  %946 = vmatprep.subr.bf16.mxu0 0
  %947 = vmatpush1.bf16.msra.mxu0 0
  %948 = vmatprep.mubr.bf16.mxu0 0
  %949 = vmatmul.mubr.bf16.gmra.mrb[0].mxu0 %v914
  %v950 = vpop.f32.mrb[0].mxu0
  %v951 = vadd.f32 0.0, %v950
  %v952 = vpop.f32.mrb[0].mxu0
  %v953 = vadd.f32 0.0, %v952
  %v954 = vpop.f32.mrb[0].mxu0
  %v955 = vpop.f32.mrb[0].mxu0
  %956 = vdwg.mxu0
  %v957 = vadd.f32 %v513, %v951
  %v958 = vadd.f32 %v514, %v953
  %v959 = vadd.f32 %v957, %v636
  %v960 = vadd.f32 %v958, %v640
  %v961 = vxor.u32 %v959, 2147483648
  %v962 = vxor.u32 %v960, 2147483648
  %v963 = vmul.f32 %v961, 1.442695
  %v964 = vpow.pop %v963
  %v965 = vmul.f32 %v962, 1.442695
  %v966 = vpow.pop %v965
  %v967 = vadd.f32 %v964, 1.0
  %v968 = vadd.f32 %v966, 1.0
  %v969 = vrcp.pop %v967
  %v970 = vmul.f32 1.0, %v969
  %v971 = vrcp.pop %v968
  %v972 = vmul.f32 1.0, %v971
  %v973 = vtanh.pop %v960
  %v974 = vmul.f32 %v970, %v905
  %976 = vrot.lane.b32.xlu0 %v973, 64
  %v977 = vpop.permute.xlu0 %976
  %v979 = vmul.f32 %v970, %v977
  %981 = vrot.lane.b32.xlu0 %v979, 64
  %v982 = vpop.permute.xlu0 %981
  %v984 = vadd.f32 %v974, %v982
  %v985 = vtanh.pop %v984
  %987 = vrot.lane.b32.xlu0 %v985, 64
  %v988 = vpop.permute.xlu0 %987
  %v990 = vmul.f32 %v972, %v988
  %v991 = vpack.c.bf16 %v990, %v990
  %v992 = vld [vmem:[%s6] sm:$0xf]
  %v993 = vld [vmem:[%s6 + $0x4] sm:$0xf]
  %v994 = vld [vmem:[%s6 + $0x8] sm:$0xf]
  %v995 = vld [vmem:[%s6 + $0xc] sm:$0xf]
  %v1000 = vunpack.c.l.b16 %v992
  %v1001 = vunpack.c.l.b16 %v993
  %v1002 = vunpack.c.l.b16 %v994
  %v1003 = vunpack.c.l.b16 %v995
  %v1004 = vpack.c.b16 %v1001, %v1000
  %v1005 = vpack.c.b16 %v1003, %v1002
  %v1009 = vsel %vm121, %v991, 0
  %1011 = vmatprep.subr.bf16.mxu0 0
  %1012 = vmatpush1.bf16.msra.mxu0 %v1004
  %1013 = vmatprep.subr.bf16.mxu0 0
  %1014 = vmatpush1.bf16.msra.mxu0 %v1005
  %1015 = vmatprep.subr.bf16.mxu0 0
  %1016 = vmatpush1.bf16.msra.mxu0 0
  %1017 = vmatprep.subr.bf16.mxu0 0
  %1018 = vmatpush1.bf16.msra.mxu0 0
  %1019 = vmatprep.subr.bf16.mxu0 0
  %1020 = vmatpush1.bf16.msra.mxu0 0
  %1021 = vmatprep.subr.bf16.mxu0 0
  %1022 = vmatpush1.bf16.msra.mxu0 0
  %1023 = vmatprep.subr.bf16.mxu0 0
  %1024 = vmatpush1.bf16.msra.mxu0 0
  %1025 = vmatprep.subr.bf16.mxu0 0
  %1026 = vmatpush1.bf16.msra.mxu0 0
  %1027 = vmatprep.subr.bf16.mxu0 0
  %1028 = vmatpush1.bf16.msra.mxu0 0
  %1029 = vmatprep.subr.bf16.mxu0 0
  %1030 = vmatpush1.bf16.msra.mxu0 0
  %1031 = vmatprep.subr.bf16.mxu0 0
  %1032 = vmatpush1.bf16.msra.mxu0 0
  %1033 = vmatprep.subr.bf16.mxu0 0
  %1034 = vmatpush1.bf16.msra.mxu0 0
  %1035 = vmatprep.subr.bf16.mxu0 0
  %1036 = vmatpush1.bf16.msra.mxu0 0
  %1037 = vmatprep.subr.bf16.mxu0 0
  %1038 = vmatpush1.bf16.msra.mxu0 0
  %1039 = vmatprep.subr.bf16.mxu0 0
  %1040 = vmatpush1.bf16.msra.mxu0 0
  %1041 = vmatprep.subr.bf16.mxu0 0
  %1042 = vmatpush1.bf16.msra.mxu0 0
  %1043 = vmatprep.mubr.bf16.mxu0 0
  %1044 = vmatmul.mubr.bf16.gmra.mrb[0].mxu0 %v1009
  %v1045 = vpop.f32.mrb[0].mxu0
  %v1046 = vadd.f32 0.0, %v1045
  %v1047 = vpop.f32.mrb[0].mxu0
  %v1048 = vpop.f32.mrb[0].mxu0
  %v1049 = vpop.f32.mrb[0].mxu0
  %1050 = vdwg.mxu0
  %v1051 = vadd.f32 %v536, %v1046
  %v1052 = vlaneseq
  %v1053 = vshrl.u32 %v1052, 7
  %v1054 = vsub.s32 0, %v1053
  %v1055 = vrot.slane %v517, %v1054
  %v1056 = vadd.f32 %v1051, %v1055
  %v1057 = vxor.u32 %v1056, 2147483648
  %v1058 = vmul.f32 %v1057, 1.442695
  %v1059 = vpow.pop %v1058
  %v1060 = vadd.f32 %v1059, 1.0
  %v1061 = vrcp.pop %v1060
  %v1062 = vmul.f32 1.0, %v1061
  %v1063 = vtanh.pop %v1056
  %1065 = vrot.lane.b32.xlu0 %v984, 96
  %v1066 = vpop.permute.xlu0 %1065
  %v1068 = vmul.f32 %v1062, %v1066
  %1070 = vrot.lane.b32.xlu0 %v1063, 32
  %v1071 = vpop.permute.xlu0 %1070
  %v1073 = vmul.f32 %v1062, %v1071
  %1075 = vrot.lane.b32.xlu0 %v1073, 32
  %v1076 = vpop.permute.xlu0 %1075
  %v1078 = vadd.f32 %v1068, %v1076
  %v1079 = vtanh.pop %v1078
  %1081 = vrot.lane.b32.xlu0 %v1079, 32
  %v1082 = vpop.permute.xlu0 %1081
  %v1084 = vmul.f32 %v1062, %v1082
  %1086 = vrot.lane.b32.xlu0 %v1084, 64
  %v1087 = vpop.permute.xlu0 %1086
  %v1089 = vadd.f32 %v292, %v1087
  %1091 = vrot.lane.b32.xlu0 %v990, 96
  %v1092 = vpop.permute.xlu0 %1091
  %v1094 = vadd.f32 %v1089, %v1092
  %v1095 = vmul.f32 %v1084, %v1084
  %1097 = vrot.lane.b32.xlu0 %v1095, 64
  %v1098 = vpop.permute.xlu0 %1097
  %v1100 = vadd.f32 %v311, %v1098
  %v1101 = vmul.f32 %v990, %v990
  %1103 = vrot.lane.b32.xlu0 %v1101, 96
  %v1104 = vpop.permute.xlu0 %1103
  %v1106 = vadd.f32 %v1100, %v1104
  %v1107 = vmul.f32 %v1094, %v1094
  %v1108 = vsub.f32 %v1107, %v1106
  %v1109 = vmul.f32 %v1108, 0.5
  %v1110 = vlaneseq
  %v1111 = vshrl.u32 %v1110, 7
  %v1112 = vsub.s32 0, %v1111
  %v1113 = vrot.slane %v43, %v1112
  %v1114 = vsub.f32 %v1109, %v1113
  %v1115 = vadd.f32 %v44, 1e-05
  %v1116 = vrsqrt.pop %v1115
  %v1117 = vlaneseq
  %v1118 = vshrl.u32 %v1117, 7
  %v1119 = vsub.s32 0, %v1118
  %v1120 = vrot.slane %v1116, %v1119
  %v1121 = vmul.f32 %v1114, %v1120
  %v1122 = vlaneseq
  %v1123 = vshrl.u32 %v1122, 7
  %v1124 = vsub.s32 0, %v1123
  %v1125 = vrot.slane %v41, %v1124
  %v1126 = vmul.f32 %v1121, %v1125
  %v1127 = vlaneseq
  %v1128 = vshrl.u32 %v1127, 7
  %v1129 = vsub.s32 0, %v1128
  %v1130 = vrot.slane %v42, %v1129
  %v1131 = vadd.f32 %v1126, %v1130
  %v1132 = vld [vmem:[%s7] sm:$0xf]
  %v1133 = vld [vmem:[%s7 + $0x4] sm:$0xf]
  %v1134 = vld [vmem:[%s7 + $0x8] sm:$0xf]
  %v1135 = vld [vmem:[%s7 + $0xc] sm:$0xf]
  %v1136 = vpack.c.bf16 %v1131, %v1131
  %v1137 = vld [vmem:[%s8] sm:$0x1]
  %v1138 = vlaneseq
  %v1139 = vshrl.u32 %v1138, 7
  %v1140 = vsub.s32 0, %v1139
  %v1141 = vrot.slane %v1137, %v1140
  %v1146 = vunpack.c.l.b16 %v1132
  %v1147 = vunpack.c.l.b16 %v1133
  %v1148 = vunpack.c.l.b16 %v1134
  %v1149 = vunpack.c.l.b16 %v1135
  %v1150 = vpack.c.b16 %v1147, %v1146
  %v1151 = vpack.c.b16 %v1149, %v1148
  %v1155 = vsel %vm121, %v1136, 0
  %1157 = vmatprep.subr.bf16.mxu0 0
  %1158 = vmatpush1.bf16.msra.mxu0 %v1150
  %1159 = vmatprep.subr.bf16.mxu0 0
  %1160 = vmatpush1.bf16.msra.mxu0 %v1151
  %1161 = vmatprep.subr.bf16.mxu0 0
  %1162 = vmatpush1.bf16.msra.mxu0 0
  %1163 = vmatprep.subr.bf16.mxu0 0
  %1164 = vmatpush1.bf16.msra.mxu0 0
  %1165 = vmatprep.subr.bf16.mxu0 0
  %1166 = vmatpush1.bf16.msra.mxu0 0
  %1167 = vmatprep.subr.bf16.mxu0 0
  %1168 = vmatpush1.bf16.msra.mxu0 0
  %1169 = vmatprep.subr.bf16.mxu0 0
  %1170 = vmatpush1.bf16.msra.mxu0 0
  %1171 = vmatprep.subr.bf16.mxu0 0
  %1172 = vmatpush1.bf16.msra.mxu0 0
  %1173 = vmatprep.subr.bf16.mxu0 0
  %1174 = vmatpush1.bf16.msra.mxu0 0
  %1175 = vmatprep.subr.bf16.mxu0 0
  %1176 = vmatpush1.bf16.msra.mxu0 0
  %1177 = vmatprep.subr.bf16.mxu0 0
  %1178 = vmatpush1.bf16.msra.mxu0 0
  %1179 = vmatprep.subr.bf16.mxu0 0
  %1180 = vmatpush1.bf16.msra.mxu0 0
  %1181 = vmatprep.subr.bf16.mxu0 0
  %1182 = vmatpush1.bf16.msra.mxu0 0
  %1183 = vmatprep.subr.bf16.mxu0 0
  %1184 = vmatpush1.bf16.msra.mxu0 0
  %1185 = vmatprep.subr.bf16.mxu0 0
  %1186 = vmatpush1.bf16.msra.mxu0 0
  %1187 = vmatprep.subr.bf16.mxu0 0
  %1188 = vmatpush1.bf16.msra.mxu0 0
  %1189 = vmatprep.mubr.bf16.mxu0 0
  %1190 = vmatmul.mubr.bf16.gmra.mrb[0].mxu0 %v1155
  %v1191 = vpop.f32.mrb[0].mxu0
  %v1192 = vadd.f32 %v1141, %v1191
  %v1193 = vpop.f32.mrb[0].mxu0
  %v1194 = vpop.f32.mrb[0].mxu0
  %v1195 = vpop.f32.mrb[0].mxu0
  %1196 = vdwg.mxu0
  %v1197 = vmax.f32 %v1192, 0.0
  %s1198 = scalar_lea.vmem %s7, 64
  %v1199 = vld [vmem:[%s1198] sm:$0xf]
  %v1200 = vld [vmem:[%s1198 + $0x4] sm:$0xf]
  %v1201 = vld [vmem:[%s1198 + $0x8] sm:$0xf]
  %v1202 = vld [vmem:[%s1198 + $0xc] sm:$0xf]
  %v1203 = vld [vmem:[%s1198 + $0x10] sm:$0xf]
  %v1204 = vld [vmem:[%s1198 + $0x14] sm:$0xf]
  %v1205 = vld [vmem:[%s1198 + $0x18] sm:$0xf]
  %v1206 = vld [vmem:[%s1198 + $0x1c] sm:$0xf]
  %v1207 = vld [vmem:[%s1198 + $0x20] sm:$0xf]
  %v1208 = vld [vmem:[%s1198 + $0x24] sm:$0xf]
  %v1209 = vld [vmem:[%s1198 + $0x28] sm:$0xf]
  %v1210 = vld [vmem:[%s1198 + $0x2c] sm:$0xf]
  %v1211 = vld [vmem:[%s1198 + $0x30] sm:$0xf]
  %v1212 = vld [vmem:[%s1198 + $0x34] sm:$0xf]
  %v1213 = vld [vmem:[%s1198 + $0x38] sm:$0xf]
  %v1214 = vld [vmem:[%s1198 + $0x3c] sm:$0xf]
  %v1215 = vpack.c.bf16 %v1197, %v1197
  %v1216 = vld [vmem:[%s8 + $0x1] sm:$0x1]
  %v1217 = vlaneseq
  %v1218 = vshrl.u32 %v1217, 7
  %v1219 = vsub.s32 0, %v1218
  %v1220 = vrot.slane %v1216, %v1219
  %v1237 = vunpack.c.l.b16 %v1199
  %v1238 = vunpack.c.l.b16 %v1200
  %v1239 = vunpack.c.l.b16 %v1201
  %v1240 = vunpack.c.l.b16 %v1202
  %v1241 = vunpack.c.l.b16 %v1203
  %v1242 = vunpack.c.l.b16 %v1204
  %v1243 = vunpack.c.l.b16 %v1205
  %v1244 = vunpack.c.l.b16 %v1206
  %v1245 = vunpack.c.l.b16 %v1207
  %v1246 = vunpack.c.l.b16 %v1208
  %v1247 = vunpack.c.l.b16 %v1209
  %v1248 = vunpack.c.l.b16 %v1210
  %v1249 = vunpack.c.l.b16 %v1211
  %v1250 = vunpack.c.l.b16 %v1212
  %v1251 = vunpack.c.l.b16 %v1213
  %v1252 = vunpack.c.l.b16 %v1214
  %v1253 = vpack.c.b16 %v1238, %v1237
  %v1254 = vpack.c.b16 %v1240, %v1239
  %v1255 = vpack.c.b16 %v1242, %v1241
  %v1256 = vpack.c.b16 %v1244, %v1243
  %v1257 = vpack.c.b16 %v1246, %v1245
  %v1258 = vpack.c.b16 %v1248, %v1247
  %v1259 = vpack.c.b16 %v1250, %v1249
  %v1260 = vpack.c.b16 %v1252, %v1251
  %1269 = vmatprep.subr.bf16.mxu0 0
  %1270 = vmatpush1.bf16.msra.mxu0 %v1253
  %1271 = vmatprep.subr.bf16.mxu0 0
  %1272 = vmatpush1.bf16.msra.mxu0 %v1254
  %1273 = vmatprep.subr.bf16.mxu0 0
  %1274 = vmatpush1.bf16.msra.mxu0 %v1255
  %1275 = vmatprep.subr.bf16.mxu0 0
  %1276 = vmatpush1.bf16.msra.mxu0 %v1256
  %1277 = vmatprep.subr.bf16.mxu0 0
  %1278 = vmatpush1.bf16.msra.mxu0 %v1257
  %1279 = vmatprep.subr.bf16.mxu0 0
  %1280 = vmatpush1.bf16.msra.mxu0 %v1258
  %1281 = vmatprep.subr.bf16.mxu0 0
  %1282 = vmatpush1.bf16.msra.mxu0 %v1259
  %1283 = vmatprep.subr.bf16.mxu0 0
  %1284 = vmatpush1.bf16.msra.mxu0 %v1260
  %1285 = vmatprep.subr.bf16.mxu0 0
  %1286 = vmatpush1.bf16.msra.mxu0 0
  %1287 = vmatprep.subr.bf16.mxu0 0
  %1288 = vmatpush1.bf16.msra.mxu0 0
  %1289 = vmatprep.subr.bf16.mxu0 0
  %1290 = vmatpush1.bf16.msra.mxu0 0
  %1291 = vmatprep.subr.bf16.mxu0 0
  %1292 = vmatpush1.bf16.msra.mxu0 0
  %1293 = vmatprep.subr.bf16.mxu0 0
  %1294 = vmatpush1.bf16.msra.mxu0 0
  %1295 = vmatprep.subr.bf16.mxu0 0
  %1296 = vmatpush1.bf16.msra.mxu0 0
  %1297 = vmatprep.subr.bf16.mxu0 0
  %1298 = vmatpush1.bf16.msra.mxu0 0
  %1299 = vmatprep.subr.bf16.mxu0 0
  %1300 = vmatpush1.bf16.msra.mxu0 0
  %1301 = vmatprep.mubr.bf16.mxu0 0
  %1302 = vmatmul.mubr.bf16.gmra.mrb[0].mxu0 %v1215
  %v1303 = vpop.f32.mrb[0].mxu0
  %v1304 = vadd.f32 %v1220, %v1303
  %v1305 = vpop.f32.mrb[0].mxu0
  %v1306 = vpop.f32.mrb[0].mxu0
  %v1307 = vpop.f32.mrb[0].mxu0
  %1308 = vdwg.mxu0
  %v1309 = vmax.f32 %v1304, 0.0
  %s1310 = scalar_lea.vmem %s7, 128
  %v1311 = vld [vmem:[%s1310] sm:$0xf]
  %v1312 = vld [vmem:[%s1310 + $0x4] sm:$0xf]
  %v1313 = vld [vmem:[%s1310 + $0x8] sm:$0xf]
  %v1314 = vld [vmem:[%s1310 + $0xc] sm:$0xf]
  %v1315 = vld [vmem:[%s1310 + $0x10] sm:$0xf]
  %v1316 = vld [vmem:[%s1310 + $0x14] sm:$0xf]
  %v1317 = vld [vmem:[%s1310 + $0x18] sm:$0xf]
  %v1318 = vld [vmem:[%s1310 + $0x1c] sm:$0xf]
  %v1319 = vpack.c.bf16 %v1309, %v1309
  %v1320 = vld [vmem:[%s8 + $0x2] sm:$0x1]
  %v1321 = vlaneseq
  %v1322 = vshrl.u32 %v1321, 7
  %v1323 = vsub.s32 0, %v1322
  %v1324 = vrot.slane %v1320, %v1323
  %v1333 = vunpack.c.l.b16 %v1311
  %v1334 = vunpack.c.l.b16 %v1312
  %v1335 = vunpack.c.l.b16 %v1313
  %v1336 = vunpack.c.l.b16 %v1314
  %v1337 = vunpack.c.l.b16 %v1315
  %v1338 = vunpack.c.l.b16 %v1316
  %v1339 = vunpack.c.l.b16 %v1317
  %v1340 = vunpack.c.l.b16 %v1318
  %v1341 = vpack.c.b16 %v1334, %v1333
  %v1342 = vpack.c.b16 %v1336, %v1335
  %v1343 = vpack.c.b16 %v1338, %v1337
  %v1344 = vpack.c.b16 %v1340, %v1339
  %v1350 = vsel %vm585, %v1319, 0
  %1352 = vmatprep.subr.bf16.mxu0 0
  %1353 = vmatpush1.bf16.msra.mxu0 %v1341
  %1354 = vmatprep.subr.bf16.mxu0 0
  %1355 = vmatpush1.bf16.msra.mxu0 %v1342
  %1356 = vmatprep.subr.bf16.mxu0 0
  %1357 = vmatpush1.bf16.msra.mxu0 %v1343
  %1358 = vmatprep.subr.bf16.mxu0 0
  %1359 = vmatpush1.bf16.msra.mxu0 %v1344
  %1360 = vmatprep.subr.bf16.mxu0 0
  %1361 = vmatpush1.bf16.msra.mxu0 0
  %1362 = vmatprep.subr.bf16.mxu0 0
  %1363 = vmatpush1.bf16.msra.mxu0 0
  %1364 = vmatprep.subr.bf16.mxu0 0
  %1365 = vmatpush1.bf16.msra.mxu0 0
  %1366 = vmatprep.subr.bf16.mxu0 0
  %1367 = vmatpush1.bf16.msra.mxu0 0
  %1368 = vmatprep.subr.bf16.mxu0 0
  %1369 = vmatpush1.bf16.msra.mxu0 0
  %1370 = vmatprep.subr.bf16.mxu0 0
  %1371 = vmatpush1.bf16.msra.mxu0 0
  %1372 = vmatprep.subr.bf16.mxu0 0
  %1373 = vmatpush1.bf16.msra.mxu0 0
  %1374 = vmatprep.subr.bf16.mxu0 0
  %1375 = vmatpush1.bf16.msra.mxu0 0
  %1376 = vmatprep.subr.bf16.mxu0 0
  %1377 = vmatpush1.bf16.msra.mxu0 0
  %1378 = vmatprep.subr.bf16.mxu0 0
  %1379 = vmatpush1.bf16.msra.mxu0 0
  %1380 = vmatprep.subr.bf16.mxu0 0
  %1381 = vmatpush1.bf16.msra.mxu0 0
  %1382 = vmatprep.subr.bf16.mxu0 0
  %1383 = vmatpush1.bf16.msra.mxu0 0
  %1384 = vmatprep.mubr.bf16.mxu0 0
  %1385 = vmatmul.mubr.bf16.gmra.mrb[0].mxu0 %v1350
  %v1386 = vpop.f32.mrb[0].mxu0
  %v1387 = vadd.f32 %v1324, %v1386
  %v1388 = vpop.f32.mrb[0].mxu0
  %v1389 = vpop.f32.mrb[0].mxu0
  %v1390 = vpop.f32.mrb[0].mxu0
  %1391 = vdwg.mxu0
  %v1392 = vmax.f32 %v1387, 0.0
  %s1393 = scalar_lea.vmem %s7, 192
  %v1394 = vld [vmem:[%s1393] sm:$0xf]
  %v1395 = vld [vmem:[%s1393 + $0x4] sm:$0xf]
  %v1396 = vld [vmem:[%s1393 + $0x8] sm:$0xf]
  %v1397 = vld [vmem:[%s1393 + $0xc] sm:$0xf]
  %v1398 = vpack.c.bf16 %v1392, %v1392
  %v1399 = vld [vmem:[%s8 + $0x3] sm:$0x1]
  %v1400 = vlaneseq
  %v1401 = vshrl.u32 %v1400, 7
  %v1402 = vsub.s32 0, %v1401
  %v1403 = vrot.slane %v1399, %v1402
  %v1408 = vunpack.c.l.b16 %v1394
  %v1409 = vunpack.c.l.b16 %v1395
  %v1410 = vunpack.c.l.b16 %v1396
  %v1411 = vunpack.c.l.b16 %v1397
  %v1412 = vpack.c.b16 %v1409, %v1408
  %v1413 = vpack.c.b16 %v1411, %v1410
  %v1417 = vsel %vm121, %v1398, 0
  %1419 = vmatprep.subr.bf16.mxu0 0
  %1420 = vmatpush1.bf16.msra.mxu0 %v1412
  %1421 = vmatprep.subr.bf16.mxu0 0
  %1422 = vmatpush1.bf16.msra.mxu0 %v1413
  %1423 = vmatprep.subr.bf16.mxu0 0
  %1424 = vmatpush1.bf16.msra.mxu0 0
  %1425 = vmatprep.subr.bf16.mxu0 0
  %1426 = vmatpush1.bf16.msra.mxu0 0
  %1427 = vmatprep.subr.bf16.mxu0 0
  %1428 = vmatpush1.bf16.msra.mxu0 0
  %1429 = vmatprep.subr.bf16.mxu0 0
  %1430 = vmatpush1.bf16.msra.mxu0 0
  %1431 = vmatprep.subr.bf16.mxu0 0
  %1432 = vmatpush1.bf16.msra.mxu0 0
  %1433 = vmatprep.subr.bf16.mxu0 0
  %1434 = vmatpush1.bf16.msra.mxu0 0
  %1435 = vmatprep.subr.bf16.mxu0 0
  %1436 = vmatpush1.bf16.msra.mxu0 0
  %1437 = vmatprep.subr.bf16.mxu0 0
  %1438 = vmatpush1.bf16.msra.mxu0 0
  %1439 = vmatprep.subr.bf16.mxu0 0
  %1440 = vmatpush1.bf16.msra.mxu0 0
  %1441 = vmatprep.subr.bf16.mxu0 0
  %1442 = vmatpush1.bf16.msra.mxu0 0
  %1443 = vmatprep.subr.bf16.mxu0 0
  %1444 = vmatpush1.bf16.msra.mxu0 0
  %1445 = vmatprep.subr.bf16.mxu0 0
  %1446 = vmatpush1.bf16.msra.mxu0 0
  %1447 = vmatprep.subr.bf16.mxu0 0
  %1448 = vmatpush1.bf16.msra.mxu0 0
  %1449 = vmatprep.subr.bf16.mxu0 0
  %1450 = vmatpush1.bf16.msra.mxu0 0
  %1451 = vmatprep.mubr.bf16.mxu0 0
  %1452 = vmatmul.mubr.bf16.gmra.mrb[0].mxu0 %v1417
  %v1453 = vpop.f32.mrb[0].mxu0
  %v1454 = vadd.f32 %v1403, %v1453
  %v1455 = vpop.f32.mrb[0].mxu0
  %v1456 = vpop.f32.mrb[0].mxu0
  %v1457 = vpop.f32.mrb[0].mxu0
  %1458 = vdwg.mxu0
  %v1459 = vmax.f32 %v1454, 0.0
  %s1460 = scalar_lea.vmem %s7, 256
  %v1461 = vld [vmem:[%s1460] sm:$0xf]
  %v1462 = vld [vmem:[%s1460 + $0x4] sm:$0xf]
  %v1463 = vld [vmem:[%s1460 + $0x8] sm:$0xf]
  %v1464 = vld [vmem:[%s1460 + $0xc] sm:$0xf]
  %v1465 = vpack.c.bf16 %v1459, %v1459
  %v1466 = vld [vmem:[%s8 + $0x4] sm:$0x1]
  %v1467 = vlaneseq
  %v1468 = vshrl.u32 %v1467, 7
  %v1469 = vsub.s32 0, %v1468
  %v1470 = vrot.slane %v1466, %v1469
  %v1475 = vunpack.c.l.b16 %v1461
  %v1476 = vunpack.c.l.b16 %v1462
  %v1477 = vunpack.c.l.b16 %v1463
  %v1478 = vunpack.c.l.b16 %v1464
  %v1479 = vpack.c.b16 %v1476, %v1475
  %v1480 = vpack.c.b16 %v1478, %v1477
  %v1484 = vsel %vm121, %v1465, 0
  %1486 = vmatprep.subr.bf16.mxu0 0
  %1487 = vmatpush1.bf16.msra.mxu0 %v1479
  %1488 = vmatprep.subr.bf16.mxu0 0
  %1489 = vmatpush1.bf16.msra.mxu0 %v1480
  %1490 = vmatprep.subr.bf16.mxu0 0
  %1491 = vmatpush1.bf16.msra.mxu0 0
  %1492 = vmatprep.subr.bf16.mxu0 0
  %1493 = vmatpush1.bf16.msra.mxu0 0
  %1494 = vmatprep.subr.bf16.mxu0 0
  %1495 = vmatpush1.bf16.msra.mxu0 0
  %1496 = vmatprep.subr.bf16.mxu0 0
  %1497 = vmatpush1.bf16.msra.mxu0 0
  %1498 = vmatprep.subr.bf16.mxu0 0
  %1499 = vmatpush1.bf16.msra.mxu0 0
  %1500 = vmatprep.subr.bf16.mxu0 0
  %1501 = vmatpush1.bf16.msra.mxu0 0
  %1502 = vmatprep.subr.bf16.mxu0 0
  %1503 = vmatpush1.bf16.msra.mxu0 0
  %1504 = vmatprep.subr.bf16.mxu0 0
  %1505 = vmatpush1.bf16.msra.mxu0 0
  %1506 = vmatprep.subr.bf16.mxu0 0
  %1507 = vmatpush1.bf16.msra.mxu0 0
  %1508 = vmatprep.subr.bf16.mxu0 0
  %1509 = vmatpush1.bf16.msra.mxu0 0
  %1510 = vmatprep.subr.bf16.mxu0 0
  %1511 = vmatpush1.bf16.msra.mxu0 0
  %1512 = vmatprep.subr.bf16.mxu0 0
  %1513 = vmatpush1.bf16.msra.mxu0 0
  %1514 = vmatprep.subr.bf16.mxu0 0
  %1515 = vmatpush1.bf16.msra.mxu0 0
  %1516 = vmatprep.subr.bf16.mxu0 0
  %1517 = vmatpush1.bf16.msra.mxu0 0
  %1518 = vmatprep.mubr.bf16.mxu0 0
  %1519 = vmatmul.mubr.bf16.gmra.mrb[0].mxu0 %v1484
  %v1520 = vpop.f32.mrb[0].mxu0
  %v1521 = vadd.f32 %v1470, %v1520
  %v1522 = vpop.f32.mrb[0].mxu0
  %v1523 = vpop.f32.mrb[0].mxu0
  %v1524 = vpop.f32.mrb[0].mxu0
  %1525 = vdwg.mxu0
  %1526 = vst [vmem:[%s9] sm:$0xff] %v1521
  // Predicated region
  $region38: #{nfm_lstm_forward.1} parent=0 // pred_check
    _
  $region39: #{nfm_lstm_forward.1} parent=0 // pred_check_branch
    %1528 = sbr.rel (0) target = $region41
  $region40: #{nfm_lstm_forward.1} parent=0 // pred_region
    _
  $region41: #{nfm_lstm_forward.1} parent=0 // pred_fallthru
    _
  // Predicated region
  $region42: #{nfm_lstm_forward.1} parent=0 // pred_check
    _
  $region43: #{nfm_lstm_forward.1} parent=0 // pred_check_branch
    %1530 = sbr.rel (0) target = $region45
  $region44: #{nfm_lstm_forward.1} parent=0 // pred_region
    _
  $region45: #{nfm_lstm_forward.1} parent=0 // pred_fallthru
    _

</llo_original>
